<compile_context>
chip_gen: v5e
topology: v5e:2x2
jax: 0.10.0
libtpu: 0.0.40
codegen_flags: <defaults>
</compile_context>

<pallas_src>
import functools

import jax
import jax.numpy as jnp
from jax.experimental import pallas as pl
from jax.experimental.pallas import tpu as pltpu

NUM_CLASSES = 3
NO = 4 + 1 + NUM_CLASSES                # outputs per anchor (x, y, w, h, obj, cls...)
BACKBONE_STRIDES = (2, 4, 8)            # downsample factors of the synthetic FPN
BACKBONE_CHANNELS = (16, 32, 64)
HEAD_HIDDEN = 32

# Lane tile (multiple of 128). Worst per-step footprint at Cin=256:
# (2048 x 256) bf16 input = 1 MiB x 2 buffers + (8 x 2048) f32 out = 64 KiB -> far below
# any generation's scoped-VMEM budget, so the tile is sized for step-overhead amortization.
MAX_TM = 2048


def _round_up(v, m):
    return ((v + m - 1) // m) * m


def _pick_tile(m):
    """Largest 128-multiple tile dividing the padded anchor count.

    Keeps >=2 grid steps whenever m_pad >= 256 so dimension_semantics=("parallel",)
    can shard the axis across both v7x TensorCores instead of stranding one.
    """
    m_pad = _round_up(m, 128)
    tm = 128
    cand = min(MAX_TM, m_pad)
    while cand >= 128:
        if m_pad % cand == 0 and not (m_pad >= 256 and m_pad // cand < 2):
            tm = cand
            break
        cand -= 128
    return tm, m_pad


def _supports_packed_bf16():
    """True on v6e / v7x (packed-bf16 VPU + EUP); False -> f32 activation math (v5e & older)."""
    try:
        kind = jax.devices()[0].device_kind.lower()
        return not any(t in kind for t in ("v2", "v3", "v4", "v5"))
    except Exception:
        return False


# ---------------------------------------------------------------------------
# Fused per-level kernel: backbone proj + SiLU -> stem + SiLU -> pred + decode
# Input block is (TM, Cin); everything downstream is (C, TM) with the anchor
# axis M on the lanes, so all matmul results and the final store are lane-dense.
# ---------------------------------------------------------------------------
def _tscd_level_kernel(x_ref, wb_ref, bb_ref, ws_ref, bs_ref, wp_ref, bp_ref,
                       o_ref, *, stride, hs, wsd, tm, bf16_act):
    # backbone projection: contract last axes of (Cb, Cin) and (TM, Cin) -> (Cb, TM).
    # The operand "transpose" happens inside the MXU feed; no XLA transpose pass.
    feat = jax.lax.dot_general(
        wb_ref[...], x_ref[...],
        dimension_numbers=(((1,), (1,)), ((), ())),
        preferred_element_type=jnp.float32)
    feat = feat + bb_ref[...]
    if bf16_act:
        feat = feat.astype(jnp.bfloat16)
        feat = feat * jax.nn.sigmoid(feat)              # packed-bf16 VPU/EUP (v6e/v7x)
    else:
        feat = (feat * jax.nn.sigmoid(feat)).astype(jnp.bfloat16)   # f32 SiLU (v5e)

    # head stem conv: (HID, Cb) @ (Cb, TM) -> (HID, TM), bias + SiLU
    stem = jnp.dot(ws_ref[...], feat, preferred_element_type=jnp.float32)
    stem = stem + bs_ref[...]
    if bf16_act:
        stem = stem.astype(jnp.bfloat16)
        stem = stem * jax.nn.sigmoid(stem)
    else:
        stem = (stem * jax.nn.sigmoid(stem)).astype(jnp.bfloat16)

    # single fused prediction matmul: (NO, HID) @ (HID, TM) -> (NO, TM), f32 accumulation.
    pred = jnp.dot(wp_ref[...], stem, preferred_element_type=jnp.float32) + bp_ref[...]

    # in-kernel YOLOX grid offsets: lane index -> anchor index -> (gx, gy).
    # Use and/shift when the spatial extents are powers of two (no int div/mod on the VPU).
    lane = jax.lax.broadcasted_iota(jnp.int32, (2, tm), 1) + pl.program_id(0) * tm
    row = jax.lax.broadcasted_iota(jnp.int32, (2, tm), 0)
    hw = hs * wsd
    if (wsd & (wsd - 1)) == 0 and (hw & (hw - 1)) == 0:
        anchor = lane & (hw - 1)
        gx = anchor & (wsd - 1)
        gy = anchor >> (wsd.bit_length() - 1)
    else:
        anchor = lane % hw
        gx = anchor % wsd
        gy = anchor // wsd
    grid2 = jnp.where(row == 0, gx, gy).astype(jnp.float32)

    # decode each group on static row slices of the value, assemble the full (NO, TM)
    # f32 tile, and store it with ONE unmasked full-tile store.
    # Padded tail lanes (m_pad > M) only ever see zero inputs + zero pred bias, so
    # exp/sigmoid stay finite; the wrapper slices them away.
    xy = (pred[0:2, :] + grid2) * stride
    wh = jnp.exp(pred[2:4, :]) * stride
    sg = jax.nn.sigmoid(pred[4:NO, :])
    o_ref[...] = jnp.concatenate([xy, wh, sg], axis=0)


def _level_forward(x_flat, wb, bb, ws, bs, wp, bp, *, stride, hs, wsd, tm, m_pad,
                   bf16_act):
    cin = x_flat.shape[1]
    cb = wb.shape[0]
    hid = ws.shape[0]
    kernel = functools.partial(_tscd_level_kernel, stride=float(stride),
                               hs=hs, wsd=wsd, tm=tm, bf16_act=bf16_act)
    return pl.pallas_call(
        kernel,
        out_shape=jax.ShapeDtypeStruct((NO, m_pad), jnp.float32),
        grid_spec=pl.GridSpec(
            grid=(m_pad // tm,),
            in_specs=[
                pl.BlockSpec((tm, cin), lambda i: (i, 0)),   # streamed patches (lane = anchor)
                pl.BlockSpec((cb, cin), lambda i: (0, 0)),   # backbone weight (VMEM-resident)
                pl.BlockSpec((cb, 1), lambda i: (0, 0)),     # backbone bias
                pl.BlockSpec((hid, cb), lambda i: (0, 0)),   # stem weight
                pl.BlockSpec((hid, 1), lambda i: (0, 0)),    # stem bias
                pl.BlockSpec((NO, hid), lambda i: (0, 0)),   # pred weight
                pl.BlockSpec((NO, 1), lambda i: (0, 0)),     # pred bias
            ],
            out_specs=pl.BlockSpec((NO, tm), lambda i: (0, i)),
        ),
        compiler_params=pltpu.CompilerParams(dimension_semantics=("parallel",)),
    )(x_flat, wb, bb, ws, bs, wp, bp)


# ---------------------------------------------------------------------------
# Parameters / glue
# ---------------------------------------------------------------------------
def init_params(in_channels=4):
    params = {"backbone": [], "head": []}
    key = jax.random.PRNGKey(42)
    for li, (s, c_out) in enumerate(zip(BACKBONE_STRIDES, BACKBONE_CHANNELS)):
        key, k1 = jax.random.split(key)
        c_in = in_channels * s * s      # space-to-depth channels
        wb = (0.05 * jax.random.normal(k1, (c_out, c_in), jnp.float32)).astype(jnp.bfloat16)
        bb = jnp.full((c_out, 1), 0.01 * (li + 1), jnp.float32)
        params["backbone"].append((wb, bb))
    for li, c_in in enumerate(BACKBONE_CHANNELS):
        key, k1, k2 = jax.random.split(key, 3)
        ws = (0.05 * jax.random.normal(k1, (HEAD_HIDDEN, c_in), jnp.float32)).astype(jnp.bfloat16)
        bs = jnp.zeros((HEAD_HIDDEN, 1), jnp.float32)
        wp = (0.05 * jax.random.normal(k2, (NO, HEAD_HIDDEN), jnp.float32)).astype(jnp.bfloat16)
        bp = jnp.zeros((NO, 1), jnp.float32)
        params["head"].append((ws, bs, wp, bp))
    return params


def _space_to_depth(x_nhwc, s):
    B, H, W, C = x_nhwc.shape
    x = x_nhwc.reshape(B, H // s, s, W // s, s, C)
    x = jnp.transpose(x, (0, 1, 3, 2, 4, 5))
    return x.reshape(B, H // s, W // s, s * s * C)


def tscd_forward(params, x_nchw):
    """Eval-mode forward of TSCD: backbone(x) -> head(fpn_outs) -> decoded detections."""
    B, C, H, W = x_nchw.shape
    # NCHW -> NHWC and bf16 BEFORE the space-to-depth reshuffles so every wrapper-side
    # data-movement pass feeding the kernels touches half the bytes.
    x = jnp.transpose(x_nchw, (0, 2, 3, 1)).astype(jnp.bfloat16)
    bf16_act = _supports_packed_bf16()

    level_outputs = []
    for (s, _), (wb, bb), (ws, bs, wp, bp) in zip(
            zip(BACKBONE_STRIDES, BACKBONE_CHANNELS),
            params["backbone"], params["head"]):
        patches = _space_to_depth(x, s)                    # (B, H/s, W/s, s*s*C) bf16
        Bp, Hs, Ws_, Cin = patches.shape
        M = Bp * Hs * Ws_
        tm, m_pad = _pick_tile(M)

        # keep the anchor-major (M, Cin) layout; no HBM transpose (handled in-MXU).
        x_flat = patches.reshape(M, Cin)
        x_flat = jnp.pad(x_flat, ((0, m_pad - M), (0, 0)))

        out_t = _level_forward(x_flat, wb, bb, ws, bs, wp, bp,
                               stride=s, hs=Hs, wsd=Ws_, tm=tm, m_pad=m_pad,
                               bf16_act=bf16_act)          # (NO, m_pad) f32
        out = out_t[:, :M].T.reshape(Bp, Hs * Ws_, NO)
        level_outputs.append(out)

    return jnp.concatenate(level_outputs, axis=1)          # (B, sum_l Hl*Wl, 4+1+NUM_CLASSES)


if __name__ == "__main__":
    key = jax.random.PRNGKey(0)
    x = jax.random.normal(key, (2, 4, 16, 16), dtype=jnp.float32)  # NCHW, like PyTorch

    params = init_params(in_channels=4)
    outputs = jax.jit(tscd_forward)(params, x)
    outputs = jax.block_until_ready(outputs)

    expected_anchors = sum((16 // s) * (16 // s) for s in BACKBONE_STRIDES)
    assert outputs.shape == (2, expected_anchors, NO), outputs.shape
    assert bool(jnp.all(jnp.isfinite(outputs)))
    print("KERNEL_OK")
</pallas_src>

<mosaic_0001>
module attributes {stable_mosaic.version = 11 : i64} {
  func.func @_tscd_level_kernel(%arg0: i32, %arg1: memref<128x64xbf16, #tpu.memory_space<vmem>>, %arg2: memref<32x64xbf16, #tpu.memory_space<vmem>>, %arg3: memref<32x1xf32, #tpu.memory_space<vmem>>, %arg4: memref<32x32xbf16, #tpu.memory_space<vmem>>, %arg5: memref<32x1xf32, #tpu.memory_space<vmem>>, %arg6: memref<8x32xbf16, #tpu.memory_space<vmem>>, %arg7: memref<8x1xf32, #tpu.memory_space<vmem>>, %arg8: memref<8x128xf32, #tpu.memory_space<vmem>>) attributes {dimension_semantics = [#tpu.dimension_semantics<parallel>], iteration_bounds = array<i64: 1>, scalar_prefetch = 0 : i64, scratch_operands = 0 : i64, tpu.core_type = #tpu.core_type<tc>, window_params = [{transform_indices = @transform_0, window_bounds = array<i64: 128, 64>}, {pipeline_mode = #tpu.pipeline_mode<synchronous>, transform_indices = @transform_1, window_bounds = array<i64: 32, 64>}, {pipeline_mode = #tpu.pipeline_mode<synchronous>, transform_indices = @transform_2, window_bounds = array<i64: 32, 1>}, {pipeline_mode = #tpu.pipeline_mode<synchronous>, transform_indices = @transform_3, window_bounds = array<i64: 32, 32>}, {pipeline_mode = #tpu.pipeline_mode<synchronous>, transform_indices = @transform_4, window_bounds = array<i64: 32, 1>}, {pipeline_mode = #tpu.pipeline_mode<synchronous>, transform_indices = @transform_5, window_bounds = array<i64: 8, 32>}, {pipeline_mode = #tpu.pipeline_mode<synchronous>, transform_indices = @transform_6, window_bounds = array<i64: 8, 1>}, {transform_indices = @transform_7, window_bounds = array<i64: 8, 128>}]} {
    %c0 = arith.constant 0 : index
    %c0_0 = arith.constant 0 : index
    %0 = vector.load %arg2[%c0, %c0_0] : memref<32x64xbf16, #tpu.memory_space<vmem>>, vector<32x64xbf16>
    %c0_1 = arith.constant 0 : index
    %c0_2 = arith.constant 0 : index
    %1 = vector.load %arg1[%c0_1, %c0_2] : memref<128x64xbf16, #tpu.memory_space<vmem>>, vector<128x64xbf16>
    %cst = arith.constant dense<0.000000e+00> : vector<32x128xf32>
    %2 = tpu.matmul %0, %1, %cst {dimension_numbers = #tpu.dot_dimension_numbers<[1], [1], [0], [0], [0, 0, 1, 0], [], []>} : vector<32x64xbf16>, vector<128x64xbf16>, vector<32x128xf32> -> vector<32x128xf32>
    %c0_3 = arith.constant 0 : index
    %c0_4 = arith.constant 0 : index
    %3 = vector.load %arg3[%c0_3, %c0_4] : memref<32x1xf32, #tpu.memory_space<vmem>>, vector<32x1xf32>
    %4 = vector.broadcast %3 : vector<32x1xf32> to vector<32x128xf32>
    %5 = arith.addf %2, %4 : vector<32x128xf32>
    %6 = arith.truncf %5 : vector<32x128xf32> to vector<32x128xbf16>
    %7 = arith.negf %6 : vector<32x128xbf16>
    %8 = math.exp %7 : vector<32x128xbf16>
    %cst_5 = arith.constant 1.000000e+00 : bf16
    %9 = vector.broadcast %cst_5 : bf16 to vector<32x128xbf16>
    %10 = arith.addf %9, %8 : vector<32x128xbf16>
    %11 = arith.divf %9, %10 : vector<32x128xbf16>
    %12 = arith.mulf %6, %11 : vector<32x128xbf16>
    %c0_6 = arith.constant 0 : index
    %c0_7 = arith.constant 0 : index
    %13 = vector.load %arg4[%c0_6, %c0_7] : memref<32x32xbf16, #tpu.memory_space<vmem>>, vector<32x32xbf16>
    %cst_8 = arith.constant dense<0.000000e+00> : vector<32x128xf32>
    %14 = tpu.matmul %13, %12, %cst_8 {dimension_numbers = #tpu.dot_dimension_numbers<[1], [0], [0], [1], [0, 0, 1, 1], [], []>} : vector<32x32xbf16>, vector<32x128xbf16>, vector<32x128xf32> -> vector<32x128xf32>
    %c0_9 = arith.constant 0 : index
    %c0_10 = arith.constant 0 : index
    %15 = vector.load %arg5[%c0_9, %c0_10] : memref<32x1xf32, #tpu.memory_space<vmem>>, vector<32x1xf32>
    %16 = vector.broadcast %15 : vector<32x1xf32> to vector<32x128xf32>
    %17 = arith.addf %14, %16 : vector<32x128xf32>
    %18 = arith.truncf %17 : vector<32x128xf32> to vector<32x128xbf16>
    %19 = arith.negf %18 : vector<32x128xbf16>
    %20 = math.exp %19 : vector<32x128xbf16>
    %cst_11 = arith.constant 1.000000e+00 : bf16
    %21 = vector.broadcast %cst_11 : bf16 to vector<32x128xbf16>
    %22 = arith.addf %21, %20 : vector<32x128xbf16>
    %23 = arith.divf %21, %22 : vector<32x128xbf16>
    %24 = arith.mulf %18, %23 : vector<32x128xbf16>
    %c0_12 = arith.constant 0 : index
    %c0_13 = arith.constant 0 : index
    %25 = vector.load %arg6[%c0_12, %c0_13] : memref<8x32xbf16, #tpu.memory_space<vmem>>, vector<8x32xbf16>
    %cst_14 = arith.constant dense<0.000000e+00> : vector<8x128xf32>
    %26 = tpu.matmul %25, %24, %cst_14 {dimension_numbers = #tpu.dot_dimension_numbers<[1], [0], [0], [1], [0, 0, 1, 1], [], []>} : vector<8x32xbf16>, vector<32x128xbf16>, vector<8x128xf32> -> vector<8x128xf32>
    %c0_15 = arith.constant 0 : index
    %c0_16 = arith.constant 0 : index
    %27 = vector.load %arg7[%c0_15, %c0_16] : memref<8x1xf32, #tpu.memory_space<vmem>>, vector<8x1xf32>
    %28 = vector.broadcast %27 : vector<8x1xf32> to vector<8x128xf32>
    %29 = arith.addf %26, %28 : vector<8x128xf32>
    %30 = tpu.iota {dimensions = array<i32: 1>} : vector<2x128xi32>
    %c128_i32 = arith.constant 128 : i32
    %31 = arith.muli %arg0, %c128_i32 : i32
    %32 = vector.broadcast %31 : i32 to vector<2x128xi32>
    %33 = arith.addi %30, %32 : vector<2x128xi32>
    %34 = tpu.iota {dimensions = array<i32: 0>} : vector<2x128xi32>
    %c15_i32 = arith.constant 15 : i32
    %35 = vector.broadcast %c15_i32 : i32 to vector<2x128xi32>
    %36 = arith.andi %33, %35 : vector<2x128xi32>
    %c3_i32 = arith.constant 3 : i32
    %37 = vector.broadcast %c3_i32 : i32 to vector<2x128xi32>
    %38 = arith.andi %36, %37 : vector<2x128xi32>
    %c2_i32 = arith.constant 2 : i32
    %39 = vector.broadcast %c2_i32 : i32 to vector<2x128xi32>
    %40 = arith.shrsi %36, %39 : vector<2x128xi32>
    %c0_i32 = arith.constant 0 : i32
    %41 = vector.broadcast %c0_i32 : i32 to vector<2x128xi32>
    %42 = arith.cmpi eq, %34, %41 : vector<2x128xi32>
    %43 = arith.select %42, %38, %40 : vector<2x128xi1>, vector<2x128xi32>
    %44 = arith.sitofp %43 : vector<2x128xi32> to vector<2x128xf32>
    %45 = vector.extract_strided_slice %29 {offsets = [0, 0], sizes = [2, 128], strides = [1, 1]} : vector<8x128xf32> to vector<2x128xf32>
    %46 = arith.addf %45, %44 : vector<2x128xf32>
    %cst_17 = arith.constant 4.000000e+00 : f32
    %47 = vector.broadcast %cst_17 : f32 to vector<2x128xf32>
    %48 = arith.mulf %46, %47 : vector<2x128xf32>
    %49 = vector.extract_strided_slice %29 {offsets = [2, 0], sizes = [2, 128], strides = [1, 1]} : vector<8x128xf32> to vector<2x128xf32>
    %50 = math.exp %49 : vector<2x128xf32>
    %cst_18 = arith.constant 4.000000e+00 : f32
    %51 = vector.broadcast %cst_18 : f32 to vector<2x128xf32>
    %52 = arith.mulf %50, %51 : vector<2x128xf32>
    %53 = vector.extract_strided_slice %29 {offsets = [4, 0], sizes = [4, 128], strides = [1, 1]} : vector<8x128xf32> to vector<4x128xf32>
    %54 = arith.negf %53 : vector<4x128xf32>
    %55 = math.exp %54 : vector<4x128xf32>
    %cst_19 = arith.constant 1.000000e+00 : f32
    %56 = vector.broadcast %cst_19 : f32 to vector<4x128xf32>
    %57 = arith.addf %56, %55 : vector<4x128xf32>
    %58 = arith.divf %56, %57 : vector<4x128xf32>
    %59 = tpu.concatenate %48, %52, %58 in 0 : vector<2x128xf32>, vector<2x128xf32>, vector<4x128xf32> -> vector<8x128xf32>
    %c0_20 = arith.constant 0 : index
    %c0_21 = arith.constant 0 : index
    %60 = vector.load %arg8[%c0_20, %c0_21] : memref<8x128xf32, #tpu.memory_space<vmem>>, vector<8x128xf32>
    tpu.vector_store %arg8[%c0_20, %c0_21], %59 {strides = array<i32>} : memref<8x128xf32, #tpu.memory_space<vmem>>, vector<8x128xf32>,
    return
  }
  func.func @transform_0(%arg0: i32) -> (i32, i32) {
    %c0_i32 = arith.constant 0 : i32
    %c0_i32_0 = arith.constant 0 : i32
    return %arg0, %c0_i32 : i32, i32
  }
  func.func @transform_1(%arg0: i32) -> (i32, i32) {
    %c0_i32 = arith.constant 0 : i32
    %c0_i32_0 = arith.constant 0 : i32
    %c0_i32_1 = arith.constant 0 : i32
    return %c0_i32, %c0_i32_0 : i32, i32
  }
  func.func @transform_2(%arg0: i32) -> (i32, i32) {
    %c0_i32 = arith.constant 0 : i32
    %c0_i32_0 = arith.constant 0 : i32
    %c0_i32_1 = arith.constant 0 : i32
    return %c0_i32, %c0_i32_0 : i32, i32
  }
  func.func @transform_3(%arg0: i32) -> (i32, i32) {
    %c0_i32 = arith.constant 0 : i32
    %c0_i32_0 = arith.constant 0 : i32
    %c0_i32_1 = arith.constant 0 : i32
    return %c0_i32, %c0_i32_0 : i32, i32
  }
  func.func @transform_4(%arg0: i32) -> (i32, i32) {
    %c0_i32 = arith.constant 0 : i32
    %c0_i32_0 = arith.constant 0 : i32
    %c0_i32_1 = arith.constant 0 : i32
    return %c0_i32, %c0_i32_0 : i32, i32
  }
  func.func @transform_5(%arg0: i32) -> (i32, i32) {
    %c0_i32 = arith.constant 0 : i32
    %c0_i32_0 = arith.constant 0 : i32
    %c0_i32_1 = arith.constant 0 : i32
    return %c0_i32, %c0_i32_0 : i32, i32
  }
  func.func @transform_6(%arg0: i32) -> (i32, i32) {
    %c0_i32 = arith.constant 0 : i32
    %c0_i32_0 = arith.constant 0 : i32
    %c0_i32_1 = arith.constant 0 : i32
    return %c0_i32, %c0_i32_0 : i32, i32
  }
  func.func @transform_7(%arg0: i32) -> (i32, i32) {
    %c0_i32 = arith.constant 0 : i32
    %c0_i32_0 = arith.constant 0 : i32
    return %c0_i32, %arg0 : i32, i32
  }
}

module attributes {stable_mosaic.version = 11 : i64} {
  func.func @_tscd_level_kernel(%arg0: i32, %arg1: memref<128x256xbf16, #tpu.memory_space<vmem>>, %arg2: memref<64x256xbf16, #tpu.memory_space<vmem>>, %arg3: memref<64x1xf32, #tpu.memory_space<vmem>>, %arg4: memref<32x64xbf16, #tpu.memory_space<vmem>>, %arg5: memref<32x1xf32, #tpu.memory_space<vmem>>, %arg6: memref<8x32xbf16, #tpu.memory_space<vmem>>, %arg7: memref<8x1xf32, #tpu.memory_space<vmem>>, %arg8: memref<8x128xf32, #tpu.memory_space<vmem>>) attributes {dimension_semantics = [#tpu.dimension_semantics<parallel>], iteration_bounds = array<i64: 1>, scalar_prefetch = 0 : i64, scratch_operands = 0 : i64, tpu.core_type = #tpu.core_type<tc>, window_params = [{transform_indices = @transform_0, window_bounds = array<i64: 128, 256>}, {pipeline_mode = #tpu.pipeline_mode<synchronous>, transform_indices = @transform_1, window_bounds = array<i64: 64, 256>}, {pipeline_mode = #tpu.pipeline_mode<synchronous>, transform_indices = @transform_2, window_bounds = array<i64: 64, 1>}, {pipeline_mode = #tpu.pipeline_mode<synchronous>, transform_indices = @transform_3, window_bounds = array<i64: 32, 64>}, {pipeline_mode = #tpu.pipeline_mode<synchronous>, transform_indices = @transform_4, window_bounds = array<i64: 32, 1>}, {pipeline_mode = #tpu.pipeline_mode<synchronous>, transform_indices = @transform_5, window_bounds = array<i64: 8, 32>}, {pipeline_mode = #tpu.pipeline_mode<synchronous>, transform_indices = @transform_6, window_bounds = array<i64: 8, 1>}, {transform_indices = @transform_7, window_bounds = array<i64: 8, 128>}]} {
    %c0 = arith.constant 0 : index
    %c0_0 = arith.constant 0 : index
    %0 = vector.load %arg2[%c0, %c0_0] : memref<64x256xbf16, #tpu.memory_space<vmem>>, vector<64x256xbf16>
    %c0_1 = arith.constant 0 : index
    %c0_2 = arith.constant 0 : index
    %1 = vector.load %arg1[%c0_1, %c0_2] : memref<128x256xbf16, #tpu.memory_space<vmem>>, vector<128x256xbf16>
    %cst = arith.constant dense<0.000000e+00> : vector<64x128xf32>
    %2 = tpu.matmul %0, %1, %cst {dimension_numbers = #tpu.dot_dimension_numbers<[1], [1], [0], [0], [0, 0, 1, 0], [], []>} : vector<64x256xbf16>, vector<128x256xbf16>, vector<64x128xf32> -> vector<64x128xf32>
    %c0_3 = arith.constant 0 : index
    %c0_4 = arith.constant 0 : index
    %3 = vector.load %arg3[%c0_3, %c0_4] : memref<64x1xf32, #tpu.memory_space<vmem>>, vector<64x1xf32>
    %4 = vector.broadcast %3 : vector<64x1xf32> to vector<64x128xf32>
    %5 = arith.addf %2, %4 : vector<64x128xf32>
    %6 = arith.truncf %5 : vector<64x128xf32> to vector<64x128xbf16>
    %7 = arith.negf %6 : vector<64x128xbf16>
    %8 = math.exp %7 : vector<64x128xbf16>
    %cst_5 = arith.constant 1.000000e+00 : bf16
    %9 = vector.broadcast %cst_5 : bf16 to vector<64x128xbf16>
    %10 = arith.addf %9, %8 : vector<64x128xbf16>
    %11 = arith.divf %9, %10 : vector<64x128xbf16>
    %12 = arith.mulf %6, %11 : vector<64x128xbf16>
    %c0_6 = arith.constant 0 : index
    %c0_7 = arith.constant 0 : index
    %13 = vector.load %arg4[%c0_6, %c0_7] : memref<32x64xbf16, #tpu.memory_space<vmem>>, vector<32x64xbf16>
    %cst_8 = arith.constant dense<0.000000e+00> : vector<32x128xf32>
    %14 = tpu.matmul %13, %12, %cst_8 {dimension_numbers = #tpu.dot_dimension_numbers<[1], [0], [0], [1], [0, 0, 1, 1], [], []>} : vector<32x64xbf16>, vector<64x128xbf16>, vector<32x128xf32> -> vector<32x128xf32>
    %c0_9 = arith.constant 0 : index
    %c0_10 = arith.constant 0 : index
    %15 = vector.load %arg5[%c0_9, %c0_10] : memref<32x1xf32, #tpu.memory_space<vmem>>, vector<32x1xf32>
    %16 = vector.broadcast %15 : vector<32x1xf32> to vector<32x128xf32>
    %17 = arith.addf %14, %16 : vector<32x128xf32>
    %18 = arith.truncf %17 : vector<32x128xf32> to vector<32x128xbf16>
    %19 = arith.negf %18 : vector<32x128xbf16>
    %20 = math.exp %19 : vector<32x128xbf16>
    %cst_11 = arith.constant 1.000000e+00 : bf16
    %21 = vector.broadcast %cst_11 : bf16 to vector<32x128xbf16>
    %22 = arith.addf %21, %20 : vector<32x128xbf16>
    %23 = arith.divf %21, %22 : vector<32x128xbf16>
    %24 = arith.mulf %18, %23 : vector<32x128xbf16>
    %c0_12 = arith.constant 0 : index
    %c0_13 = arith.constant 0 : index
    %25 = vector.load %arg6[%c0_12, %c0_13] : memref<8x32xbf16, #tpu.memory_space<vmem>>, vector<8x32xbf16>
    %cst_14 = arith.constant dense<0.000000e+00> : vector<8x128xf32>
    %26 = tpu.matmul %25, %24, %cst_14 {dimension_numbers = #tpu.dot_dimension_numbers<[1], [0], [0], [1], [0, 0, 1, 1], [], []>} : vector<8x32xbf16>, vector<32x128xbf16>, vector<8x128xf32> -> vector<8x128xf32>
    %c0_15 = arith.constant 0 : index
    %c0_16 = arith.constant 0 : index
    %27 = vector.load %arg7[%c0_15, %c0_16] : memref<8x1xf32, #tpu.memory_space<vmem>>, vector<8x1xf32>
    %28 = vector.broadcast %27 : vector<8x1xf32> to vector<8x128xf32>
    %29 = arith.addf %26, %28 : vector<8x128xf32>
    %30 = tpu.iota {dimensions = array<i32: 1>} : vector<2x128xi32>
    %c128_i32 = arith.constant 128 : i32
    %31 = arith.muli %arg0, %c128_i32 : i32
    %32 = vector.broadcast %31 : i32 to vector<2x128xi32>
    %33 = arith.addi %30, %32 : vector<2x128xi32>
    %34 = tpu.iota {dimensions = array<i32: 0>} : vector<2x128xi32>
    %c3_i32 = arith.constant 3 : i32
    %35 = vector.broadcast %c3_i32 : i32 to vector<2x128xi32>
    %36 = arith.andi %33, %35 : vector<2x128xi32>
    %c1_i32 = arith.constant 1 : i32
    %37 = vector.broadcast %c1_i32 : i32 to vector<2x128xi32>
    %38 = arith.andi %36, %37 : vector<2x128xi32>
    %c1_i32_17 = arith.constant 1 : i32
    %39 = vector.broadcast %c1_i32_17 : i32 to vector<2x128xi32>
    %40 = arith.shrsi %36, %39 : vector<2x128xi32>
    %c0_i32 = arith.constant 0 : i32
    %41 = vector.broadcast %c0_i32 : i32 to vector<2x128xi32>
    %42 = arith.cmpi eq, %34, %41 : vector<2x128xi32>
    %43 = arith.select %42, %38, %40 : vector<2x128xi1>, vector<2x128xi32>
    %44 = arith.sitofp %43 : vector<2x128xi32> to vector<2x128xf32>
    %45 = vector.extract_strided_slice %29 {offsets = [0, 0], sizes = [2, 128], strides = [1, 1]} : vector<8x128xf32> to vector<2x128xf32>
    %46 = arith.addf %45, %44 : vector<2x128xf32>
    %cst_18 = arith.constant 8.000000e+00 : f32
    %47 = vector.broadcast %cst_18 : f32 to vector<2x128xf32>
    %48 = arith.mulf %46, %47 : vector<2x128xf32>
    %49 = vector.extract_strided_slice %29 {offsets = [2, 0], sizes = [2, 128], strides = [1, 1]} : vector<8x128xf32> to vector<2x128xf32>
    %50 = math.exp %49 : vector<2x128xf32>
    %cst_19 = arith.constant 8.000000e+00 : f32
    %51 = vector.broadcast %cst_19 : f32 to vector<2x128xf32>
    %52 = arith.mulf %50, %51 : vector<2x128xf32>
    %53 = vector.extract_strided_slice %29 {offsets = [4, 0], sizes = [4, 128], strides = [1, 1]} : vector<8x128xf32> to vector<4x128xf32>
    %54 = arith.negf %53 : vector<4x128xf32>
    %55 = math.exp %54 : vector<4x128xf32>
    %cst_20 = arith.constant 1.000000e+00 : f32
    %56 = vector.broadcast %cst_20 : f32 to vector<4x128xf32>
    %57 = arith.addf %56, %55 : vector<4x128xf32>
    %58 = arith.divf %56, %57 : vector<4x128xf32>
    %59 = tpu.concatenate %48, %52, %58 in 0 : vector<2x128xf32>, vector<2x128xf32>, vector<4x128xf32> -> vector<8x128xf32>
    %c0_21 = arith.constant 0 : index
    %c0_22 = arith.constant 0 : index
    %60 = vector.load %arg8[%c0_21, %c0_22] : memref<8x128xf32, #tpu.memory_space<vmem>>, vector<8x128xf32>
    tpu.vector_store %arg8[%c0_21, %c0_22], %59 {strides = array<i32>} : memref<8x128xf32, #tpu.memory_space<vmem>>, vector<8x128xf32>,
    return
  }
  func.func @transform_0(%arg0: i32) -> (i32, i32) {
    %c0_i32 = arith.constant 0 : i32
    %c0_i32_0 = arith.constant 0 : i32
    return %arg0, %c0_i32 : i32, i32
  }
  func.func @transform_1(%arg0: i32) -> (i32, i32) {
    %c0_i32 = arith.constant 0 : i32
    %c0_i32_0 = arith.constant 0 : i32
    %c0_i32_1 = arith.constant 0 : i32
    return %c0_i32, %c0_i32_0 : i32, i32
  }
  func.func @transform_2(%arg0: i32) -> (i32, i32) {
    %c0_i32 = arith.constant 0 : i32
    %c0_i32_0 = arith.constant 0 : i32
    %c0_i32_1 = arith.constant 0 : i32
    return %c0_i32, %c0_i32_0 : i32, i32
  }
  func.func @transform_3(%arg0: i32) -> (i32, i32) {
    %c0_i32 = arith.constant 0 : i32
    %c0_i32_0 = arith.constant 0 : i32
    %c0_i32_1 = arith.constant 0 : i32
    return %c0_i32, %c0_i32_0 : i32, i32
  }
  func.func @transform_4(%arg0: i32) -> (i32, i32) {
    %c0_i32 = arith.constant 0 : i32
    %c0_i32_0 = arith.constant 0 : i32
    %c0_i32_1 = arith.constant 0 : i32
    return %c0_i32, %c0_i32_0 : i32, i32
  }
  func.func @transform_5(%arg0: i32) -> (i32, i32) {
    %c0_i32 = arith.constant 0 : i32
    %c0_i32_0 = arith.constant 0 : i32
    %c0_i32_1 = arith.constant 0 : i32
    return %c0_i32, %c0_i32_0 : i32, i32
  }
  func.func @transform_6(%arg0: i32) -> (i32, i32) {
    %c0_i32 = arith.constant 0 : i32
    %c0_i32_0 = arith.constant 0 : i32
    %c0_i32_1 = arith.constant 0 : i32
    return %c0_i32, %c0_i32_0 : i32, i32
  }
  func.func @transform_7(%arg0: i32) -> (i32, i32) {
    %c0_i32 = arith.constant 0 : i32
    %c0_i32_0 = arith.constant 0 : i32
    return %c0_i32, %arg0 : i32, i32
  }
}

module attributes {stable_mosaic.version = 11 : i64} {
  func.func @_tscd_level_kernel(%arg0: i32, %arg1: memref<128x16xbf16, #tpu.memory_space<vmem>>, %arg2: memref<16x16xbf16, #tpu.memory_space<vmem>>, %arg3: memref<16x1xf32, #tpu.memory_space<vmem>>, %arg4: memref<32x16xbf16, #tpu.memory_space<vmem>>, %arg5: memref<32x1xf32, #tpu.memory_space<vmem>>, %arg6: memref<8x32xbf16, #tpu.memory_space<vmem>>, %arg7: memref<8x1xf32, #tpu.memory_space<vmem>>, %arg8: memref<8x128xf32, #tpu.memory_space<vmem>>) attributes {dimension_semantics = [#tpu.dimension_semantics<parallel>], iteration_bounds = array<i64: 1>, scalar_prefetch = 0 : i64, scratch_operands = 0 : i64, tpu.core_type = #tpu.core_type<tc>, window_params = [{transform_indices = @transform_0, window_bounds = array<i64: 128, 16>}, {pipeline_mode = #tpu.pipeline_mode<synchronous>, transform_indices = @transform_1, window_bounds = array<i64: 16, 16>}, {pipeline_mode = #tpu.pipeline_mode<synchronous>, transform_indices = @transform_2, window_bounds = array<i64: 16, 1>}, {pipeline_mode = #tpu.pipeline_mode<synchronous>, transform_indices = @transform_3, window_bounds = array<i64: 32, 16>}, {pipeline_mode = #tpu.pipeline_mode<synchronous>, transform_indices = @transform_4, window_bounds = array<i64: 32, 1>}, {pipeline_mode = #tpu.pipeline_mode<synchronous>, transform_indices = @transform_5, window_bounds = array<i64: 8, 32>}, {pipeline_mode = #tpu.pipeline_mode<synchronous>, transform_indices = @transform_6, window_bounds = array<i64: 8, 1>}, {transform_indices = @transform_7, window_bounds = array<i64: 8, 128>}]} {
    %c0 = arith.constant 0 : index
    %c0_0 = arith.constant 0 : index
    %0 = vector.load %arg2[%c0, %c0_0] : memref<16x16xbf16, #tpu.memory_space<vmem>>, vector<16x16xbf16>
    %c0_1 = arith.constant 0 : index
    %c0_2 = arith.constant 0 : index
    %1 = vector.load %arg1[%c0_1, %c0_2] : memref<128x16xbf16, #tpu.memory_space<vmem>>, vector<128x16xbf16>
    %cst = arith.constant dense<0.000000e+00> : vector<16x128xf32>
    %2 = tpu.matmul %0, %1, %cst {dimension_numbers = #tpu.dot_dimension_numbers<[1], [1], [0], [0], [0, 0, 1, 0], [], []>} : vector<16x16xbf16>, vector<128x16xbf16>, vector<16x128xf32> -> vector<16x128xf32>
    %c0_3 = arith.constant 0 : index
    %c0_4 = arith.constant 0 : index
    %3 = vector.load %arg3[%c0_3, %c0_4] : memref<16x1xf32, #tpu.memory_space<vmem>>, vector<16x1xf32>
    %4 = vector.broadcast %3 : vector<16x1xf32> to vector<16x128xf32>
    %5 = arith.addf %2, %4 : vector<16x128xf32>
    %6 = arith.truncf %5 : vector<16x128xf32> to vector<16x128xbf16>
    %7 = arith.negf %6 : vector<16x128xbf16>
    %8 = math.exp %7 : vector<16x128xbf16>
    %cst_5 = arith.constant 1.000000e+00 : bf16
    %9 = vector.broadcast %cst_5 : bf16 to vector<16x128xbf16>
    %10 = arith.addf %9, %8 : vector<16x128xbf16>
    %11 = arith.divf %9, %10 : vector<16x128xbf16>
    %12 = arith.mulf %6, %11 : vector<16x128xbf16>
    %c0_6 = arith.constant 0 : index
    %c0_7 = arith.constant 0 : index
    %13 = vector.load %arg4[%c0_6, %c0_7] : memref<32x16xbf16, #tpu.memory_space<vmem>>, vector<32x16xbf16>
    %cst_8 = arith.constant dense<0.000000e+00> : vector<32x128xf32>
    %14 = tpu.matmul %13, %12, %cst_8 {dimension_numbers = #tpu.dot_dimension_numbers<[1], [0], [0], [1], [0, 0, 1, 1], [], []>} : vector<32x16xbf16>, vector<16x128xbf16>, vector<32x128xf32> -> vector<32x128xf32>
    %c0_9 = arith.constant 0 : index
    %c0_10 = arith.constant 0 : index
    %15 = vector.load %arg5[%c0_9, %c0_10] : memref<32x1xf32, #tpu.memory_space<vmem>>, vector<32x1xf32>
    %16 = vector.broadcast %15 : vector<32x1xf32> to vector<32x128xf32>
    %17 = arith.addf %14, %16 : vector<32x128xf32>
    %18 = arith.truncf %17 : vector<32x128xf32> to vector<32x128xbf16>
    %19 = arith.negf %18 : vector<32x128xbf16>
    %20 = math.exp %19 : vector<32x128xbf16>
    %cst_11 = arith.constant 1.000000e+00 : bf16
    %21 = vector.broadcast %cst_11 : bf16 to vector<32x128xbf16>
    %22 = arith.addf %21, %20 : vector<32x128xbf16>
    %23 = arith.divf %21, %22 : vector<32x128xbf16>
    %24 = arith.mulf %18, %23 : vector<32x128xbf16>
    %c0_12 = arith.constant 0 : index
    %c0_13 = arith.constant 0 : index
    %25 = vector.load %arg6[%c0_12, %c0_13] : memref<8x32xbf16, #tpu.memory_space<vmem>>, vector<8x32xbf16>
    %cst_14 = arith.constant dense<0.000000e+00> : vector<8x128xf32>
    %26 = tpu.matmul %25, %24, %cst_14 {dimension_numbers = #tpu.dot_dimension_numbers<[1], [0], [0], [1], [0, 0, 1, 1], [], []>} : vector<8x32xbf16>, vector<32x128xbf16>, vector<8x128xf32> -> vector<8x128xf32>
    %c0_15 = arith.constant 0 : index
    %c0_16 = arith.constant 0 : index
    %27 = vector.load %arg7[%c0_15, %c0_16] : memref<8x1xf32, #tpu.memory_space<vmem>>, vector<8x1xf32>
    %28 = vector.broadcast %27 : vector<8x1xf32> to vector<8x128xf32>
    %29 = arith.addf %26, %28 : vector<8x128xf32>
    %30 = tpu.iota {dimensions = array<i32: 1>} : vector<2x128xi32>
    %c128_i32 = arith.constant 128 : i32
    %31 = arith.muli %arg0, %c128_i32 : i32
    %32 = vector.broadcast %31 : i32 to vector<2x128xi32>
    %33 = arith.addi %30, %32 : vector<2x128xi32>
    %34 = tpu.iota {dimensions = array<i32: 0>} : vector<2x128xi32>
    %c63_i32 = arith.constant 63 : i32
    %35 = vector.broadcast %c63_i32 : i32 to vector<2x128xi32>
    %36 = arith.andi %33, %35 : vector<2x128xi32>
    %c7_i32 = arith.constant 7 : i32
    %37 = vector.broadcast %c7_i32 : i32 to vector<2x128xi32>
    %38 = arith.andi %36, %37 : vector<2x128xi32>
    %c3_i32 = arith.constant 3 : i32
    %39 = vector.broadcast %c3_i32 : i32 to vector<2x128xi32>
    %40 = arith.shrsi %36, %39 : vector<2x128xi32>
    %c0_i32 = arith.constant 0 : i32
    %41 = vector.broadcast %c0_i32 : i32 to vector<2x128xi32>
    %42 = arith.cmpi eq, %34, %41 : vector<2x128xi32>
    %43 = arith.select %42, %38, %40 : vector<2x128xi1>, vector<2x128xi32>
    %44 = arith.sitofp %43 : vector<2x128xi32> to vector<2x128xf32>
    %45 = vector.extract_strided_slice %29 {offsets = [0, 0], sizes = [2, 128], strides = [1, 1]} : vector<8x128xf32> to vector<2x128xf32>
    %46 = arith.addf %45, %44 : vector<2x128xf32>
    %cst_17 = arith.constant 2.000000e+00 : f32
    %47 = vector.broadcast %cst_17 : f32 to vector<2x128xf32>
    %48 = arith.mulf %46, %47 : vector<2x128xf32>
    %49 = vector.extract_strided_slice %29 {offsets = [2, 0], sizes = [2, 128], strides = [1, 1]} : vector<8x128xf32> to vector<2x128xf32>
    %50 = math.exp %49 : vector<2x128xf32>
    %cst_18 = arith.constant 2.000000e+00 : f32
    %51 = vector.broadcast %cst_18 : f32 to vector<2x128xf32>
    %52 = arith.mulf %50, %51 : vector<2x128xf32>
    %53 = vector.extract_strided_slice %29 {offsets = [4, 0], sizes = [4, 128], strides = [1, 1]} : vector<8x128xf32> to vector<4x128xf32>
    %54 = arith.negf %53 : vector<4x128xf32>
    %55 = math.exp %54 : vector<4x128xf32>
    %cst_19 = arith.constant 1.000000e+00 : f32
    %56 = vector.broadcast %cst_19 : f32 to vector<4x128xf32>
    %57 = arith.addf %56, %55 : vector<4x128xf32>
    %58 = arith.divf %56, %57 : vector<4x128xf32>
    %59 = tpu.concatenate %48, %52, %58 in 0 : vector<2x128xf32>, vector<2x128xf32>, vector<4x128xf32> -> vector<8x128xf32>
    %c0_20 = arith.constant 0 : index
    %c0_21 = arith.constant 0 : index
    %60 = vector.load %arg8[%c0_20, %c0_21] : memref<8x128xf32, #tpu.memory_space<vmem>>, vector<8x128xf32>
    tpu.vector_store %arg8[%c0_20, %c0_21], %59 {strides = array<i32>} : memref<8x128xf32, #tpu.memory_space<vmem>>, vector<8x128xf32>,
    return
  }
  func.func @transform_0(%arg0: i32) -> (i32, i32) {
    %c0_i32 = arith.constant 0 : i32
    %c0_i32_0 = arith.constant 0 : i32
    return %arg0, %c0_i32 : i32, i32
  }
  func.func @transform_1(%arg0: i32) -> (i32, i32) {
    %c0_i32 = arith.constant 0 : i32
    %c0_i32_0 = arith.constant 0 : i32
    %c0_i32_1 = arith.constant 0 : i32
    return %c0_i32, %c0_i32_0 : i32, i32
  }
  func.func @transform_2(%arg0: i32) -> (i32, i32) {
    %c0_i32 = arith.constant 0 : i32
    %c0_i32_0 = arith.constant 0 : i32
    %c0_i32_1 = arith.constant 0 : i32
    return %c0_i32, %c0_i32_0 : i32, i32
  }
  func.func @transform_3(%arg0: i32) -> (i32, i32) {
    %c0_i32 = arith.constant 0 : i32
    %c0_i32_0 = arith.constant 0 : i32
    %c0_i32_1 = arith.constant 0 : i32
    return %c0_i32, %c0_i32_0 : i32, i32
  }
  func.func @transform_4(%arg0: i32) -> (i32, i32) {
    %c0_i32 = arith.constant 0 : i32
    %c0_i32_0 = arith.constant 0 : i32
    %c0_i32_1 = arith.constant 0 : i32
    return %c0_i32, %c0_i32_0 : i32, i32
  }
  func.func @transform_5(%arg0: i32) -> (i32, i32) {
    %c0_i32 = arith.constant 0 : i32
    %c0_i32_0 = arith.constant 0 : i32
    %c0_i32_1 = arith.constant 0 : i32
    return %c0_i32, %c0_i32_0 : i32, i32
  }
  func.func @transform_6(%arg0: i32) -> (i32, i32) {
    %c0_i32 = arith.constant 0 : i32
    %c0_i32_0 = arith.constant 0 : i32
    %c0_i32_1 = arith.constant 0 : i32
    return %c0_i32, %c0_i32_0 : i32, i32
  }
  func.func @transform_7(%arg0: i32) -> (i32, i32) {
    %c0_i32 = arith.constant 0 : i32
    %c0_i32_0 = arith.constant 0 : i32
    return %c0_i32, %arg0 : i32, i32
  }
}

</mosaic_0001>

<llo_original>
// kernel: tscd_forward.4
$region0: #{tscd_forward.4}
  #allocation0 [shape = 'u32[]', space=smem, size = 0x4, offset = 0x4, fixed_abs, tag = 'smem constant byte address 0x4 - core index']
  #allocation1 [shape = 'u32[72,128]{1,0:T(1,128)}', space=vmem, size = 0x9000, scoped, tag = 'internal scratch']
  %s0 = inlined_call_operand.vmem [shape: bf16[128,64], index: 0, kind: input, shape index: {}]
  %s1 = inlined_call_operand.vmem [shape: bf16[32,64], index: 1, kind: input, shape index: {}]
  %s2 = inlined_call_operand.vmem [shape: f32[32,1], index: 2, kind: input, shape index: {}]
  %s3 = inlined_call_operand.vmem [shape: bf16[32,32], index: 3, kind: input, shape index: {}]
  %s4 = inlined_call_operand.vmem [shape: f32[32,1], index: 4, kind: input, shape index: {}]
  %s5 = inlined_call_operand.vmem [shape: bf16[8,32], index: 5, kind: input, shape index: {}]
  %s6 = inlined_call_operand.vmem [shape: f32[8,1], index: 6, kind: input, shape index: {}]
  %s7 = inlined_call_operand.vmem [shape: f32[8,128], index: 7, kind: output, shape index: {}]
  %s8 = sld [smem:[#allocation0]]
  $region38: #{tscd_forward.4} parent=0
    _
  %s10 = ssub.s32 1, %s8
  %s11 = scalar_select 0, %s10, %s8
  // Predicated region
  $region2: #{tscd_forward.4} parent=0 // pred_check
    _
  $region3: #{tscd_forward.4} parent=0 // pred_check_branch
    %13 = sbr.rel (0) target = $region5
  $region4: #{tscd_forward.4} parent=0 // pred_region
    _
  $region5: #{tscd_forward.4} parent=0 // pred_fallthru
    _
  // Predicated region
  $region6: #{tscd_forward.4} parent=0 // pred_check
    _
  $region7: #{tscd_forward.4} parent=0 // pred_check_branch
    %15 = sbr.rel (0) target = $region9
  $region8: #{tscd_forward.4} parent=0 // pred_region
    _
  $region9: #{tscd_forward.4} parent=0 // pred_fallthru
    _
  // Predicated region
  $region10: #{tscd_forward.4} parent=0 // pred_check
    _
  $region11: #{tscd_forward.4} parent=0 // pred_check_branch
    %17 = sbr.rel (0) target = $region13
  $region12: #{tscd_forward.4} parent=0 // pred_region
    _
  $region13: #{tscd_forward.4} parent=0 // pred_fallthru
    _
  // Predicated region
  $region14: #{tscd_forward.4} parent=0 // pred_check
    _
  $region15: #{tscd_forward.4} parent=0 // pred_check_branch
    %19 = sbr.rel (0) target = $region17
  $region16: #{tscd_forward.4} parent=0 // pred_region
    _
  $region17: #{tscd_forward.4} parent=0 // pred_fallthru
    _
  // Predicated region
  $region18: #{tscd_forward.4} parent=0 // pred_check
    _
  $region19: #{tscd_forward.4} parent=0 // pred_check_branch
    %21 = sbr.rel (0) target = $region21
  $region20: #{tscd_forward.4} parent=0 // pred_region
    _
  $region21: #{tscd_forward.4} parent=0 // pred_fallthru
    _
  // Predicated region
  $region22: #{tscd_forward.4} parent=0 // pred_check
    _
  $region23: #{tscd_forward.4} parent=0 // pred_check_branch
    %23 = sbr.rel (0) target = $region25
  $region24: #{tscd_forward.4} parent=0 // pred_region
    _
  $region25: #{tscd_forward.4} parent=0 // pred_fallthru
    _
  // Predicated region
  $region26: #{tscd_forward.4} parent=0 // pred_check
    _
  $region27: #{tscd_forward.4} parent=0 // pred_check_branch
    %25 = sbr.rel (0) target = $region29
  $region28: #{tscd_forward.4} parent=0 // pred_region
    _
  $region29: #{tscd_forward.4} parent=0 // pred_fallthru
    _
  %v28 = vld [vmem:[%s1] sm:$0xf]
  %v29 = vld [vmem:[%s1 + $0x4] sm:$0xf]
  %v30 = vld [vmem:[%s1 + $0x8] sm:$0xf]
  %v31 = vld [vmem:[%s1 + $0xc] sm:$0xf]
  %v32 = vld [vmem:[%s0] sm:$0xf]
  %v33 = vld [vmem:[%s0 + $0x4] sm:$0xf]
  %v34 = vld [vmem:[%s0 + $0x8] sm:$0xf]
  %v35 = vld [vmem:[%s0 + $0xc] sm:$0xf]
  %v36 = vld [vmem:[%s0 + $0x10] sm:$0xf]
  %v37 = vld [vmem:[%s0 + $0x14] sm:$0xf]
  %v38 = vld [vmem:[%s0 + $0x18] sm:$0xf]
  %v39 = vld [vmem:[%s0 + $0x1c] sm:$0xf]
  %v40 = vld [vmem:[%s0 + $0x20] sm:$0xf]
  %v41 = vld [vmem:[%s0 + $0x24] sm:$0xf]
  %v42 = vld [vmem:[%s0 + $0x28] sm:$0xf]
  %v43 = vld [vmem:[%s0 + $0x2c] sm:$0xf]
  %v44 = vld [vmem:[%s0 + $0x30] sm:$0xf]
  %v45 = vld [vmem:[%s0 + $0x34] sm:$0xf]
  %v46 = vld [vmem:[%s0 + $0x38] sm:$0xf]
  %v47 = vld [vmem:[%s0 + $0x3c] sm:$0xf]
  %v48 = vld [vmem:[%s2] sm:$0xff]
  %v49 = vld [vmem:[%s2 + $0x8] sm:$0xff]
  %v50 = vld [vmem:[%s2 + $0x10] sm:$0xff]
  %v51 = vld [vmem:[%s2 + $0x18] sm:$0xff]
  %53 = vset.pattern.permute.xlu0 0
  %54 = vperm.xlu0 %53, %v48
  %v55 = vpop.permute.xlu0 %54
  %58 = vset.pattern.permute.xlu0 0
  %59 = vperm.xlu0 %58, %v49
  %v60 = vpop.permute.xlu0 %59
  %63 = vset.pattern.permute.xlu0 0
  %64 = vperm.xlu0 %63, %v50
  %v65 = vpop.permute.xlu0 %64
  %68 = vset.pattern.permute.xlu0 0
  %69 = vperm.xlu0 %68, %v51
  %v70 = vpop.permute.xlu0 %69
  %v76 = vunpack.c.l.b16 %v28
  %v77 = vunpack.c.l.b16 %v29
  %v78 = vunpack.c.l.b16 %v30
  %v79 = vunpack.c.l.b16 %v31
  %v80 = vpack.c.b16 %v77, %v76
  %v81 = vpack.c.b16 %v79, %v78
  %v98 = vunpack.c.l.b16 %v32
  %v99 = vunpack.c.l.b16 %v33
  %v100 = vunpack.c.l.b16 %v34
  %v101 = vunpack.c.l.b16 %v35
  %v102 = vunpack.c.l.b16 %v36
  %v103 = vunpack.c.l.b16 %v37
  %v104 = vunpack.c.l.b16 %v38
  %v105 = vunpack.c.l.b16 %v39
  %v106 = vunpack.c.l.b16 %v40
  %v107 = vunpack.c.l.b16 %v41
  %v108 = vunpack.c.l.b16 %v42
  %v109 = vunpack.c.l.b16 %v43
  %v110 = vunpack.c.l.b16 %v44
  %v111 = vunpack.c.l.b16 %v45
  %v112 = vunpack.c.l.b16 %v46
  %v113 = vunpack.c.l.b16 %v47
  %v114 = vpack.c.b16 %v99, %v98
  %v115 = vpack.c.b16 %v101, %v100
  %v116 = vpack.c.b16 %v103, %v102
  %v117 = vpack.c.b16 %v105, %v104
  %v118 = vpack.c.b16 %v107, %v106
  %v119 = vpack.c.b16 %v109, %v108
  %v120 = vpack.c.b16 %v111, %v110
  %v121 = vpack.c.b16 %v113, %v112
  %vm122 = vcmask 523264
  %v124 = vsel %vm122, %v80, 0
  %v127 = vsel %vm122, %v81, 0
  %v130 = vsel %vm122, %v114, 0
  %v133 = vsel %vm122, %v115, 0
  %v136 = vsel %vm122, %v116, 0
  %v139 = vsel %vm122, %v117, 0
  %v142 = vsel %vm122, %v118, 0
  %v145 = vsel %vm122, %v119, 0
  %v148 = vsel %vm122, %v120, 0
  %v151 = vsel %vm122, %v121, 0
  %153 = vmatpush.bf16.xpose.msra.mxu0 %v151
  %154 = vmatpush.bf16.xpose.msra.mxu0 %v148
  %155 = vmatpush.bf16.xpose.msra.mxu0 %v145
  %156 = vmatpush.bf16.xpose.msra.mxu0 %v142
  %157 = vmatpush.bf16.xpose.msra.mxu0 %v139
  %158 = vmatpush.bf16.xpose.msra.mxu0 %v136
  %159 = vmatpush.bf16.xpose.msra.mxu0 %v133
  %160 = vmatpush.bf16.xpose.msra.mxu0 %v130
  %161 = vmatmul.bf16.gmra.mxu0 %v124
  %v162 = vpop.f32.mrf.mxu0
  %v163 = vadd.f32 %v55, %v162
  %v164 = vpop.f32.mrf.mxu0
  %v165 = vadd.f32 %v60, %v164
  %166 = vmatmul.bf16.gmra.mxu0 %v127
  %v167 = vpop.f32.mrf.mxu0
  %v168 = vadd.f32 %v65, %v167
  %v169 = vpop.f32.mrf.mxu0
  %v170 = vadd.f32 %v70, %v169
  %171 = vdwg.mxu0
  %v172 = vpack.c.bf16 %v163, %v163
  %v173 = vpack.c.bf16 %v165, %v165
  %v174 = vpack.c.bf16 %v168, %v168
  %v175 = vpack.c.bf16 %v170, %v170
  %v176 = vxor.u32 %v172, 2147516416
  %v177 = vxor.u32 %v173, 2147516416
  %v178 = vxor.u32 %v174, 2147516416
  %v179 = vxor.u32 %v175, 2147516416
  %v180 = vunpack.c.l.bf16 %v176
  %v181 = vunpack.c.l.bf16 %v177
  %v182 = vunpack.c.l.bf16 %v178
  %v183 = vunpack.c.l.bf16 %v179
  %v184 = vmul.f32 %v180, 1.442695
  %v185 = vpow.pop %v184
  %v186 = vmul.f32 %v181, 1.442695
  %v187 = vpow.pop %v186
  %v188 = vmul.f32 %v182, 1.442695
  %v189 = vpow.pop %v188
  %v190 = vmul.f32 %v183, 1.442695
  %v191 = vpow.pop %v190
  %v192 = vpack.c.bf16 %v185, %v185
  %v193 = vpack.c.bf16 %v187, %v187
  %v194 = vpack.c.bf16 %v189, %v189
  %v195 = vpack.c.bf16 %v191, %v191
  %v196 = vunpack.c.l.bf16 %v192
  %v197 = vunpack.c.l.bf16 %v193
  %v198 = vunpack.c.l.bf16 %v194
  %v199 = vunpack.c.l.bf16 %v195
  %v200 = vadd.f32 %v196, 1.0
  %v201 = vadd.f32 %v197, 1.0
  %v202 = vadd.f32 %v198, 1.0
  %v203 = vadd.f32 %v199, 1.0
  %v204 = vpack.c.bf16 %v200, %v200
  %v205 = vpack.c.bf16 %v201, %v201
  %v206 = vpack.c.bf16 %v202, %v202
  %v207 = vpack.c.bf16 %v203, %v203
  %v208 = vunpack.c.h.bf16 1065369472
  %v209 = vunpack.c.l.bf16 1065369472
  %v210 = vunpack.c.h.bf16 %v204
  %v211 = vunpack.c.l.bf16 %v204
  %v212 = vrcp.pop %v210
  %v213 = vmul.f32 %v208, %v212
  %v214 = vrcp.pop %v211
  %v215 = vmul.f32 %v209, %v214
  %v216 = vpack.c.bf16 %v213, %v215
  %v217 = vunpack.c.h.bf16 %v205
  %v218 = vunpack.c.l.bf16 %v205
  %v219 = vrcp.pop %v217
  %v220 = vmul.f32 %v208, %v219
  %v221 = vrcp.pop %v218
  %v222 = vmul.f32 %v209, %v221
  %v223 = vpack.c.bf16 %v220, %v222
  %v224 = vunpack.c.h.bf16 %v206
  %v225 = vunpack.c.l.bf16 %v206
  %v226 = vrcp.pop %v224
  %v227 = vmul.f32 %v208, %v226
  %v228 = vrcp.pop %v225
  %v229 = vmul.f32 %v209, %v228
  %v230 = vpack.c.bf16 %v227, %v229
  %v231 = vunpack.c.h.bf16 %v207
  %v232 = vunpack.c.l.bf16 %v207
  %v233 = vrcp.pop %v231
  %v234 = vmul.f32 %v208, %v233
  %v235 = vrcp.pop %v232
  %v236 = vmul.f32 %v209, %v235
  %v237 = vpack.c.bf16 %v234, %v236
  %v238 = vunpack.c.l.bf16 %v172
  %v239 = vunpack.c.l.bf16 %v173
  %v240 = vunpack.c.l.bf16 %v174
  %v241 = vunpack.c.l.bf16 %v175
  %v242 = vunpack.c.l.bf16 %v216
  %v243 = vunpack.c.l.bf16 %v223
  %v244 = vunpack.c.l.bf16 %v230
  %v245 = vunpack.c.l.bf16 %v237
  %v246 = vmul.f32 %v238, %v242
  %v247 = vmul.f32 %v239, %v243
  %v248 = vmul.f32 %v240, %v244
  %v249 = vmul.f32 %v241, %v245
  %v250 = vpack.c.bf16 %v247, %v246
  %v251 = vpack.c.bf16 %v249, %v248
  %v252 = vld [vmem:[%s3] sm:$0xf]
  %v253 = vld [vmem:[%s3 + $0x4] sm:$0xf]
  %v254 = vld [vmem:[%s3 + $0x8] sm:$0xf]
  %v255 = vld [vmem:[%s3 + $0xc] sm:$0xf]
  %v256 = vld [vmem:[%s4] sm:$0xff]
  %v257 = vld [vmem:[%s4 + $0x8] sm:$0xff]
  %v258 = vld [vmem:[%s4 + $0x10] sm:$0xff]
  %v259 = vld [vmem:[%s4 + $0x18] sm:$0xff]
  %261 = vset.pattern.permute.xlu0 0
  %262 = vperm.xlu0 %261, %v256
  %v263 = vpop.permute.xlu0 %262
  %266 = vset.pattern.permute.xlu0 0
  %267 = vperm.xlu0 %266, %v257
  %v268 = vpop.permute.xlu0 %267
  %271 = vset.pattern.permute.xlu0 0
  %272 = vperm.xlu0 %271, %v258
  %v273 = vpop.permute.xlu0 %272
  %276 = vset.pattern.permute.xlu0 0
  %277 = vperm.xlu0 %276, %v259
  %v278 = vpop.permute.xlu0 %277
  %v284 = vunpack.c.l.b16 %v252
  %v285 = vunpack.c.l.b16 %v253
  %v286 = vunpack.c.l.b16 %v254
  %v287 = vunpack.c.l.b16 %v255
  %v288 = vpack.c.b16 %v285, %v284
  %v289 = vpack.c.b16 %v287, %v286
  %vm290 = vcmask 261120
  %v292 = vsel %vm290, %v288, 0
  %v295 = vsel %vm290, %v289, 0
  %297 = vmatpush.bf16.msra.mxu0 0
  %298 = vmatpush.bf16.msra.mxu0 0
  %299 = vmatpush.bf16.msra.mxu0 0
  %300 = vmatpush.bf16.msra.mxu0 0
  %301 = vmatpush.bf16.msra.mxu0 0
  %302 = vmatpush.bf16.msra.mxu0 0
  %303 = vmatpush.bf16.msra.mxu0 %v251
  %304 = vmatpush.bf16.msra.mxu0 %v250
  %305 = vmatmul.bf16.gmra.mxu0 %v292
  %v306 = vpop.f32.mrf.mxu0
  %v307 = vadd.f32 %v263, %v306
  %v308 = vpop.f32.mrf.mxu0
  %v309 = vadd.f32 %v268, %v308
  %310 = vmatmul.bf16.gmra.mxu0 %v295
  %v311 = vpop.f32.mrf.mxu0
  %v312 = vadd.f32 %v273, %v311
  %v313 = vpop.f32.mrf.mxu0
  %v314 = vadd.f32 %v278, %v313
  %315 = vdwg.mxu0
  %v316 = vpack.c.bf16 %v307, %v307
  %v317 = vpack.c.bf16 %v309, %v309
  %v318 = vpack.c.bf16 %v312, %v312
  %v319 = vpack.c.bf16 %v314, %v314
  %v320 = vxor.u32 %v316, 2147516416
  %v321 = vxor.u32 %v317, 2147516416
  %v322 = vxor.u32 %v318, 2147516416
  %v323 = vxor.u32 %v319, 2147516416
  %v324 = vunpack.c.l.bf16 %v320
  %v325 = vunpack.c.l.bf16 %v321
  %v326 = vunpack.c.l.bf16 %v322
  %v327 = vunpack.c.l.bf16 %v323
  %v328 = vmul.f32 %v324, 1.442695
  %v329 = vpow.pop %v328
  %v330 = vmul.f32 %v325, 1.442695
  %v331 = vpow.pop %v330
  %v332 = vmul.f32 %v326, 1.442695
  %v333 = vpow.pop %v332
  %v334 = vmul.f32 %v327, 1.442695
  %v335 = vpow.pop %v334
  %v336 = vpack.c.bf16 %v329, %v329
  %v337 = vpack.c.bf16 %v331, %v331
  %v338 = vpack.c.bf16 %v333, %v333
  %v339 = vpack.c.bf16 %v335, %v335
  %v340 = vunpack.c.l.bf16 %v336
  %v341 = vunpack.c.l.bf16 %v337
  %v342 = vunpack.c.l.bf16 %v338
  %v343 = vunpack.c.l.bf16 %v339
  %v344 = vadd.f32 %v340, 1.0
  %v345 = vadd.f32 %v341, 1.0
  %v346 = vadd.f32 %v342, 1.0
  %v347 = vadd.f32 %v343, 1.0
  %v348 = vpack.c.bf16 %v344, %v344
  %v349 = vpack.c.bf16 %v345, %v345
  %v350 = vpack.c.bf16 %v346, %v346
  %v351 = vpack.c.bf16 %v347, %v347
  %v352 = vunpack.c.h.bf16 %v348
  %v353 = vunpack.c.l.bf16 %v348
  %v354 = vrcp.pop %v352
  %v355 = vmul.f32 %v208, %v354
  %v356 = vrcp.pop %v353
  %v357 = vmul.f32 %v209, %v356
  %v358 = vpack.c.bf16 %v355, %v357
  %v359 = vunpack.c.h.bf16 %v349
  %v360 = vunpack.c.l.bf16 %v349
  %v361 = vrcp.pop %v359
  %v362 = vmul.f32 %v208, %v361
  %v363 = vrcp.pop %v360
  %v364 = vmul.f32 %v209, %v363
  %v365 = vpack.c.bf16 %v362, %v364
  %v366 = vunpack.c.h.bf16 %v350
  %v367 = vunpack.c.l.bf16 %v350
  %v368 = vrcp.pop %v366
  %v369 = vmul.f32 %v208, %v368
  %v370 = vrcp.pop %v367
  %v371 = vmul.f32 %v209, %v370
  %v372 = vpack.c.bf16 %v369, %v371
  %v373 = vunpack.c.h.bf16 %v351
  %v374 = vunpack.c.l.bf16 %v351
  %v375 = vrcp.pop %v373
  %v376 = vmul.f32 %v208, %v375
  %v377 = vrcp.pop %v374
  %v378 = vmul.f32 %v209, %v377
  %v379 = vpack.c.bf16 %v376, %v378
  %v380 = vunpack.c.l.bf16 %v316
  %v381 = vunpack.c.l.bf16 %v317
  %v382 = vunpack.c.l.bf16 %v318
  %v383 = vunpack.c.l.bf16 %v319
  %v384 = vunpack.c.l.bf16 %v358
  %v385 = vunpack.c.l.bf16 %v365
  %v386 = vunpack.c.l.bf16 %v372
  %v387 = vunpack.c.l.bf16 %v379
  %v388 = vmul.f32 %v380, %v384
  %v389 = vmul.f32 %v381, %v385
  %v390 = vmul.f32 %v382, %v386
  %v391 = vmul.f32 %v383, %v387
  %v392 = vpack.c.bf16 %v389, %v388
  %v393 = vpack.c.bf16 %v391, %v390
  %v394 = vld [vmem:[%s5] sm:$0xf]
  %v395 = vld [vmem:[%s6] sm:$0xff]
  %397 = vset.pattern.permute.xlu0 0
  %398 = vperm.xlu0 %397, %v395
  %v399 = vpop.permute.xlu0 %398
  %v402 = vsel %vm290, %v394, 0
  %404 = vmatpush.bf16.msra.mxu0 0
  %405 = vmatpush.bf16.msra.mxu0 0
  %406 = vmatpush.bf16.msra.mxu0 0
  %407 = vmatpush.bf16.msra.mxu0 0
  %408 = vmatpush.bf16.msra.mxu0 0
  %409 = vmatpush.bf16.msra.mxu0 0
  %410 = vmatpush.bf16.msra.mxu0 %v393
  %411 = vmatpush.bf16.msra.mxu0 %v392
  %412 = vmatmul.bf16.gmra.mxu0 %v402
  %v413 = vpop.f32.mrf.mxu0
  %v414 = vadd.f32 %v399, %v413
  %v415 = vpop.f32.mrf.mxu0
  %416 = vdwg.mxu0
  %v417 = vlaneseq
  %v418 = vand.u32 %v417, 127
  %s419 = smul.u32 0, 128
  %v420 = vstv %s419
  %v421 = vadd.s32 %v418, %v420
  %v422 = vlaneseq
  %v423 = vshrl.u32 %v422, 7
  %v424 = vand.u32 %v421, 15
  %v425 = vand.u32 %v424, 3
  %v426 = vshra.s32 %v424, 2
  %vm427 = vcmp.eq.s32.totalorder %v423, 0
  %v428 = vsel %vm427, %v425, %v426
  %v429 = vcvt.s32.f32 %v428
  %v430 = vadd.f32 %v414, %v429
  %v431 = vmul.f32 %v430, 4.0
  %v432 = vmul.f32 %v414, 1.442695
  %v433 = vpow.pop %v432
  %v434 = vmul.f32 %v433, 4.0
  %v435 = vxor.u32 %v414, 2147483648
  %v436 = vmul.f32 %v435, 1.442695
  %v437 = vpow.pop %v436
  %v438 = vadd.f32 %v437, 1.0
  %v439 = vrcp.pop %v438
  %v440 = vmul.f32 %v438, %v439
  %v441 = vsub.f32 1.0, %v440
  %v442 = vmul.f32 %v439, %v441
  %v443 = vadd.f32 %v439, %v442
  %vm444 = vweird.f32 %v438
  %vm445 = vweird.f32 %v439
  %vm446 = vmor %vm444, %vm445
  %v447 = vsel %vm446, %v439, %v443
  %v448 = vand.u32 2147483647, %v438
  %vm449 = vcmp.eq.f32.partialorder %v448, 8.507059e+37
  %v450 = vand.u32 %v438, 2147483648
  %v451 = vor.u32 1.1754944e-38, %v450
  %v452 = vsel %vm449, %v451, %v447
  %v453 = vmul.f32 1.0, %v452
  %vm454 = vcmask 1041408
  %v455 = vsel %vm454, %v431, %v434
  %vm456 = vcmask 1043456
  %v457 = vsel %vm456, %v455, %v453
  %458 = vst [vmem:[%s7] sm:$0xff] %v457
  // Predicated region
  $region30: #{tscd_forward.4} parent=0 // pred_check
    _
  $region31: #{tscd_forward.4} parent=0 // pred_check_branch
    %460 = sbr.rel (0) target = $region33
  $region32: #{tscd_forward.4} parent=0 // pred_region
    _
  $region33: #{tscd_forward.4} parent=0 // pred_fallthru
    _
  // Predicated region
  $region34: #{tscd_forward.4} parent=0 // pred_check
    _
  $region35: #{tscd_forward.4} parent=0 // pred_check_branch
    %462 = sbr.rel (0) target = $region37
  $region36: #{tscd_forward.4} parent=0 // pred_region
    _
  $region37: #{tscd_forward.4} parent=0 // pred_fallthru
    _

// kernel: tscd_forward.5
$region0: #{tscd_forward.5}
  #allocation0 [shape = 'u32[]', space=smem, size = 0x4, offset = 0x4, fixed_abs, tag = 'smem constant byte address 0x4 - core index']
  #allocation1 [shape = 'u32[72,128]{1,0:T(1,128)}', space=vmem, size = 0x9000, scoped, tag = 'internal scratch']
  %s0 = inlined_call_operand.vmem [shape: bf16[128,256], index: 0, kind: input, shape index: {}]
  %s1 = inlined_call_operand.vmem [shape: bf16[64,256], index: 1, kind: input, shape index: {}]
  %s2 = inlined_call_operand.vmem [shape: f32[64,1], index: 2, kind: input, shape index: {}]
  %s3 = inlined_call_operand.vmem [shape: bf16[32,64], index: 3, kind: input, shape index: {}]
  %s4 = inlined_call_operand.vmem [shape: f32[32,1], index: 4, kind: input, shape index: {}]
  %s5 = inlined_call_operand.vmem [shape: bf16[8,32], index: 5, kind: input, shape index: {}]
  %s6 = inlined_call_operand.vmem [shape: f32[8,1], index: 6, kind: input, shape index: {}]
  %s7 = inlined_call_operand.vmem [shape: f32[8,128], index: 7, kind: output, shape index: {}]
  %s8 = sld [smem:[#allocation0]]
  $region38: #{tscd_forward.5} parent=0
    _
  %s10 = ssub.s32 1, %s8
  %s11 = scalar_select 0, %s10, %s8
  // Predicated region
  $region2: #{tscd_forward.5} parent=0 // pred_check
    _
  $region3: #{tscd_forward.5} parent=0 // pred_check_branch
    %13 = sbr.rel (0) target = $region5
  $region4: #{tscd_forward.5} parent=0 // pred_region
    _
  $region5: #{tscd_forward.5} parent=0 // pred_fallthru
    _
  // Predicated region
  $region6: #{tscd_forward.5} parent=0 // pred_check
    _
  $region7: #{tscd_forward.5} parent=0 // pred_check_branch
    %15 = sbr.rel (0) target = $region9
  $region8: #{tscd_forward.5} parent=0 // pred_region
    _
  $region9: #{tscd_forward.5} parent=0 // pred_fallthru
    _
  // Predicated region
  $region10: #{tscd_forward.5} parent=0 // pred_check
    _
  $region11: #{tscd_forward.5} parent=0 // pred_check_branch
    %17 = sbr.rel (0) target = $region13
  $region12: #{tscd_forward.5} parent=0 // pred_region
    _
  $region13: #{tscd_forward.5} parent=0 // pred_fallthru
    _
  // Predicated region
  $region14: #{tscd_forward.5} parent=0 // pred_check
    _
  $region15: #{tscd_forward.5} parent=0 // pred_check_branch
    %19 = sbr.rel (0) target = $region17
  $region16: #{tscd_forward.5} parent=0 // pred_region
    _
  $region17: #{tscd_forward.5} parent=0 // pred_fallthru
    _
  // Predicated region
  $region18: #{tscd_forward.5} parent=0 // pred_check
    _
  $region19: #{tscd_forward.5} parent=0 // pred_check_branch
    %21 = sbr.rel (0) target = $region21
  $region20: #{tscd_forward.5} parent=0 // pred_region
    _
  $region21: #{tscd_forward.5} parent=0 // pred_fallthru
    _
  // Predicated region
  $region22: #{tscd_forward.5} parent=0 // pred_check
    _
  $region23: #{tscd_forward.5} parent=0 // pred_check_branch
    %23 = sbr.rel (0) target = $region25
  $region24: #{tscd_forward.5} parent=0 // pred_region
    _
  $region25: #{tscd_forward.5} parent=0 // pred_fallthru
    _
  // Predicated region
  $region26: #{tscd_forward.5} parent=0 // pred_check
    _
  $region27: #{tscd_forward.5} parent=0 // pred_check_branch
    %25 = sbr.rel (0) target = $region29
  $region28: #{tscd_forward.5} parent=0 // pred_region
    _
  $region29: #{tscd_forward.5} parent=0 // pred_fallthru
    _
  %v28 = vld [vmem:[%s1] sm:$0xff]
  %v29 = vld [vmem:[%s1 + $0x8] sm:$0xff]
  %v30 = vld [vmem:[%s1 + $0x10] sm:$0xff]
  %v31 = vld [vmem:[%s1 + $0x18] sm:$0xff]
  %v32 = vld [vmem:[%s1 + $0x20] sm:$0xff]
  %v33 = vld [vmem:[%s1 + $0x28] sm:$0xff]
  %v34 = vld [vmem:[%s1 + $0x30] sm:$0xff]
  %v35 = vld [vmem:[%s1 + $0x38] sm:$0xff]
  %v36 = vld [vmem:[%s0] sm:$0xff]
  %v37 = vld [vmem:[%s0 + $0x8] sm:$0xff]
  %v38 = vld [vmem:[%s0 + $0x10] sm:$0xff]
  %v39 = vld [vmem:[%s0 + $0x18] sm:$0xff]
  %v40 = vld [vmem:[%s0 + $0x20] sm:$0xff]
  %v41 = vld [vmem:[%s0 + $0x28] sm:$0xff]
  %v42 = vld [vmem:[%s0 + $0x30] sm:$0xff]
  %v43 = vld [vmem:[%s0 + $0x38] sm:$0xff]
  %v44 = vld [vmem:[%s0 + $0x40] sm:$0xff]
  %v45 = vld [vmem:[%s0 + $0x48] sm:$0xff]
  %v46 = vld [vmem:[%s0 + $0x50] sm:$0xff]
  %v47 = vld [vmem:[%s0 + $0x58] sm:$0xff]
  %v48 = vld [vmem:[%s0 + $0x60] sm:$0xff]
  %v49 = vld [vmem:[%s0 + $0x68] sm:$0xff]
  %v50 = vld [vmem:[%s0 + $0x70] sm:$0xff]
  %v51 = vld [vmem:[%s0 + $0x78] sm:$0xff]
  %v52 = vld [vmem:[%s2] sm:$0xff]
  %v53 = vld [vmem:[%s2 + $0x8] sm:$0xff]
  %v54 = vld [vmem:[%s2 + $0x10] sm:$0xff]
  %v55 = vld [vmem:[%s2 + $0x18] sm:$0xff]
  %v56 = vld [vmem:[%s2 + $0x20] sm:$0xff]
  %v57 = vld [vmem:[%s2 + $0x28] sm:$0xff]
  %v58 = vld [vmem:[%s2 + $0x30] sm:$0xff]
  %v59 = vld [vmem:[%s2 + $0x38] sm:$0xff]
  %61 = vset.pattern.permute.xlu0 0
  %62 = vperm.xlu0 %61, %v52
  %v63 = vpop.permute.xlu0 %62
  %66 = vset.pattern.permute.xlu0 0
  %67 = vperm.xlu0 %66, %v53
  %v68 = vpop.permute.xlu0 %67
  %71 = vset.pattern.permute.xlu0 0
  %72 = vperm.xlu0 %71, %v54
  %v73 = vpop.permute.xlu0 %72
  %76 = vset.pattern.permute.xlu0 0
  %77 = vperm.xlu0 %76, %v55
  %v78 = vpop.permute.xlu0 %77
  %81 = vset.pattern.permute.xlu0 0
  %82 = vperm.xlu0 %81, %v56
  %v83 = vpop.permute.xlu0 %82
  %86 = vset.pattern.permute.xlu0 0
  %87 = vperm.xlu0 %86, %v57
  %v88 = vpop.permute.xlu0 %87
  %91 = vset.pattern.permute.xlu0 0
  %92 = vperm.xlu0 %91, %v58
  %v93 = vpop.permute.xlu0 %92
  %96 = vset.pattern.permute.xlu0 0
  %97 = vperm.xlu0 %96, %v59
  %v98 = vpop.permute.xlu0 %97
  %v108 = vunpack.c.l.b16 %v28
  %v109 = vunpack.c.h.b16 %v28
  %v110 = vunpack.c.l.b16 %v29
  %v111 = vunpack.c.h.b16 %v29
  %v112 = vunpack.c.l.b16 %v30
  %v113 = vunpack.c.h.b16 %v30
  %v114 = vunpack.c.l.b16 %v31
  %v115 = vunpack.c.h.b16 %v31
  %v116 = vunpack.c.l.b16 %v32
  %v117 = vunpack.c.h.b16 %v32
  %v118 = vunpack.c.l.b16 %v33
  %v119 = vunpack.c.h.b16 %v33
  %v120 = vunpack.c.l.b16 %v34
  %v121 = vunpack.c.h.b16 %v34
  %v122 = vunpack.c.l.b16 %v35
  %v123 = vunpack.c.h.b16 %v35
  %v124 = vpack.c.b16 %v110, %v108
  %v125 = vpack.c.b16 %v111, %v109
  %v126 = vpack.c.b16 %v114, %v112
  %v127 = vpack.c.b16 %v115, %v113
  %v128 = vpack.c.b16 %v118, %v116
  %v129 = vpack.c.b16 %v119, %v117
  %v130 = vpack.c.b16 %v122, %v120
  %v131 = vpack.c.b16 %v123, %v121
  %v156 = vunpack.c.l.b16 %v36
  %v157 = vunpack.c.h.b16 %v36
  %v158 = vunpack.c.l.b16 %v37
  %v159 = vunpack.c.h.b16 %v37
  %v160 = vunpack.c.l.b16 %v38
  %v161 = vunpack.c.h.b16 %v38
  %v162 = vunpack.c.l.b16 %v39
  %v163 = vunpack.c.h.b16 %v39
  %v164 = vunpack.c.l.b16 %v40
  %v165 = vunpack.c.h.b16 %v40
  %v166 = vunpack.c.l.b16 %v41
  %v167 = vunpack.c.h.b16 %v41
  %v168 = vunpack.c.l.b16 %v42
  %v169 = vunpack.c.h.b16 %v42
  %v170 = vunpack.c.l.b16 %v43
  %v171 = vunpack.c.h.b16 %v43
  %v172 = vunpack.c.l.b16 %v44
  %v173 = vunpack.c.h.b16 %v44
  %v174 = vunpack.c.l.b16 %v45
  %v175 = vunpack.c.h.b16 %v45
  %v176 = vunpack.c.l.b16 %v46
  %v177 = vunpack.c.h.b16 %v46
  %v178 = vunpack.c.l.b16 %v47
  %v179 = vunpack.c.h.b16 %v47
  %v180 = vunpack.c.l.b16 %v48
  %v181 = vunpack.c.h.b16 %v48
  %v182 = vunpack.c.l.b16 %v49
  %v183 = vunpack.c.h.b16 %v49
  %v184 = vunpack.c.l.b16 %v50
  %v185 = vunpack.c.h.b16 %v50
  %v186 = vunpack.c.l.b16 %v51
  %v187 = vunpack.c.h.b16 %v51
  %v188 = vpack.c.b16 %v158, %v156
  %v189 = vpack.c.b16 %v159, %v157
  %v190 = vpack.c.b16 %v162, %v160
  %v191 = vpack.c.b16 %v163, %v161
  %v192 = vpack.c.b16 %v166, %v164
  %v193 = vpack.c.b16 %v167, %v165
  %v194 = vpack.c.b16 %v170, %v168
  %v195 = vpack.c.b16 %v171, %v169
  %v196 = vpack.c.b16 %v174, %v172
  %v197 = vpack.c.b16 %v175, %v173
  %v198 = vpack.c.b16 %v178, %v176
  %v199 = vpack.c.b16 %v179, %v177
  %v200 = vpack.c.b16 %v182, %v180
  %v201 = vpack.c.b16 %v183, %v181
  %v202 = vpack.c.b16 %v186, %v184
  %v203 = vpack.c.b16 %v187, %v185
  %220 = vmatpush.bf16.xpose.msra.mxu0 %v202
  %221 = vmatpush.bf16.xpose.msra.mxu0 %v200
  %222 = vmatpush.bf16.xpose.msra.mxu0 %v198
  %223 = vmatpush.bf16.xpose.msra.mxu0 %v196
  %224 = vmatpush.bf16.xpose.msra.mxu0 %v194
  %225 = vmatpush.bf16.xpose.msra.mxu0 %v192
  %226 = vmatpush.bf16.xpose.msra.mxu0 %v190
  %227 = vmatpush.bf16.xpose.msra.mxu0 %v188
  %228 = vmatmul.bf16.gmra.mxu0 %v124
  %v229 = vpop.f32.mrf.mxu0
  %v230 = vadd.f32 %v63, %v229
  %v231 = vpop.f32.mrf.mxu0
  %v232 = vadd.f32 %v68, %v231
  %233 = vmatmul.bf16.gmra.mxu0 %v126
  %v234 = vpop.f32.mrf.mxu0
  %v235 = vadd.f32 %v73, %v234
  %v236 = vpop.f32.mrf.mxu0
  %v237 = vadd.f32 %v78, %v236
  %238 = vmatmul.bf16.gmra.mxu0 %v128
  %v239 = vpop.f32.mrf.mxu0
  %v240 = vadd.f32 %v83, %v239
  %v241 = vpop.f32.mrf.mxu0
  %v242 = vadd.f32 %v88, %v241
  %243 = vmatmul.bf16.gmra.mxu0 %v130
  %v244 = vpop.f32.mrf.mxu0
  %v245 = vadd.f32 %v93, %v244
  %v246 = vpop.f32.mrf.mxu0
  %v247 = vadd.f32 %v98, %v246
  %248 = vdwg.mxu0
  %249 = vmatpush.bf16.xpose.msra.mxu0 %v203
  %250 = vmatpush.bf16.xpose.msra.mxu0 %v201
  %251 = vmatpush.bf16.xpose.msra.mxu0 %v199
  %252 = vmatpush.bf16.xpose.msra.mxu0 %v197
  %253 = vmatpush.bf16.xpose.msra.mxu0 %v195
  %254 = vmatpush.bf16.xpose.msra.mxu0 %v193
  %255 = vmatpush.bf16.xpose.msra.mxu0 %v191
  %256 = vmatpush.bf16.xpose.msra.mxu0 %v189
  %257 = vmatmul.bf16.gmra.mxu0 %v125
  %v258 = vpop.f32.mrf.mxu0
  %v259 = vadd.f32 %v230, %v258
  %v260 = vpop.f32.mrf.mxu0
  %v261 = vadd.f32 %v232, %v260
  %262 = vmatmul.bf16.gmra.mxu0 %v127
  %v263 = vpop.f32.mrf.mxu0
  %v264 = vadd.f32 %v235, %v263
  %v265 = vpop.f32.mrf.mxu0
  %v266 = vadd.f32 %v237, %v265
  %267 = vmatmul.bf16.gmra.mxu0 %v129
  %v268 = vpop.f32.mrf.mxu0
  %v269 = vadd.f32 %v240, %v268
  %v270 = vpop.f32.mrf.mxu0
  %v271 = vadd.f32 %v242, %v270
  %272 = vmatmul.bf16.gmra.mxu0 %v131
  %v273 = vpop.f32.mrf.mxu0
  %v274 = vadd.f32 %v245, %v273
  %v275 = vpop.f32.mrf.mxu0
  %v276 = vadd.f32 %v247, %v275
  %277 = vdwg.mxu0
  %v278 = vpack.c.bf16 %v259, %v259
  %v279 = vpack.c.bf16 %v261, %v261
  %v280 = vpack.c.bf16 %v264, %v264
  %v281 = vpack.c.bf16 %v266, %v266
  %v282 = vpack.c.bf16 %v269, %v269
  %v283 = vpack.c.bf16 %v271, %v271
  %v284 = vpack.c.bf16 %v274, %v274
  %v285 = vpack.c.bf16 %v276, %v276
  %v286 = vxor.u32 %v278, 2147516416
  %v287 = vxor.u32 %v279, 2147516416
  %v288 = vxor.u32 %v280, 2147516416
  %v289 = vxor.u32 %v281, 2147516416
  %v290 = vxor.u32 %v282, 2147516416
  %v291 = vxor.u32 %v283, 2147516416
  %v292 = vxor.u32 %v284, 2147516416
  %v293 = vxor.u32 %v285, 2147516416
  %v294 = vunpack.c.l.bf16 %v286
  %v295 = vunpack.c.l.bf16 %v287
  %v296 = vunpack.c.l.bf16 %v288
  %v297 = vunpack.c.l.bf16 %v289
  %v298 = vunpack.c.l.bf16 %v290
  %v299 = vunpack.c.l.bf16 %v291
  %v300 = vunpack.c.l.bf16 %v292
  %v301 = vunpack.c.l.bf16 %v293
  %v302 = vmul.f32 %v294, 1.442695
  %v303 = vpow.pop %v302
  %v304 = vmul.f32 %v295, 1.442695
  %v305 = vpow.pop %v304
  %v306 = vmul.f32 %v296, 1.442695
  %v307 = vpow.pop %v306
  %v308 = vmul.f32 %v297, 1.442695
  %v309 = vpow.pop %v308
  %v310 = vmul.f32 %v298, 1.442695
  %v311 = vpow.pop %v310
  %v312 = vmul.f32 %v299, 1.442695
  %v313 = vpow.pop %v312
  %v314 = vmul.f32 %v300, 1.442695
  %v315 = vpow.pop %v314
  %v316 = vmul.f32 %v301, 1.442695
  %v317 = vpow.pop %v316
  %v318 = vpack.c.bf16 %v303, %v303
  %v319 = vpack.c.bf16 %v305, %v305
  %v320 = vpack.c.bf16 %v307, %v307
  %v321 = vpack.c.bf16 %v309, %v309
  %v322 = vpack.c.bf16 %v311, %v311
  %v323 = vpack.c.bf16 %v313, %v313
  %v324 = vpack.c.bf16 %v315, %v315
  %v325 = vpack.c.bf16 %v317, %v317
  %v326 = vunpack.c.l.bf16 %v318
  %v327 = vunpack.c.l.bf16 %v319
  %v328 = vunpack.c.l.bf16 %v320
  %v329 = vunpack.c.l.bf16 %v321
  %v330 = vunpack.c.l.bf16 %v322
  %v331 = vunpack.c.l.bf16 %v323
  %v332 = vunpack.c.l.bf16 %v324
  %v333 = vunpack.c.l.bf16 %v325
  %v334 = vadd.f32 %v326, 1.0
  %v335 = vadd.f32 %v327, 1.0
  %v336 = vadd.f32 %v328, 1.0
  %v337 = vadd.f32 %v329, 1.0
  %v338 = vadd.f32 %v330, 1.0
  %v339 = vadd.f32 %v331, 1.0
  %v340 = vadd.f32 %v332, 1.0
  %v341 = vadd.f32 %v333, 1.0
  %v342 = vpack.c.bf16 %v334, %v334
  %v343 = vpack.c.bf16 %v335, %v335
  %v344 = vpack.c.bf16 %v336, %v336
  %v345 = vpack.c.bf16 %v337, %v337
  %v346 = vpack.c.bf16 %v338, %v338
  %v347 = vpack.c.bf16 %v339, %v339
  %v348 = vpack.c.bf16 %v340, %v340
  %v349 = vpack.c.bf16 %v341, %v341
  %v350 = vunpack.c.h.bf16 1065369472
  %v351 = vunpack.c.l.bf16 1065369472
  %v352 = vunpack.c.h.bf16 %v342
  %v353 = vunpack.c.l.bf16 %v342
  %v354 = vrcp.pop %v352
  %v355 = vmul.f32 %v350, %v354
  %v356 = vrcp.pop %v353
  %v357 = vmul.f32 %v351, %v356
  %v358 = vpack.c.bf16 %v355, %v357
  %v359 = vunpack.c.h.bf16 %v343
  %v360 = vunpack.c.l.bf16 %v343
  %v361 = vrcp.pop %v359
  %v362 = vmul.f32 %v350, %v361
  %v363 = vrcp.pop %v360
  %v364 = vmul.f32 %v351, %v363
  %v365 = vpack.c.bf16 %v362, %v364
  %v366 = vunpack.c.h.bf16 %v344
  %v367 = vunpack.c.l.bf16 %v344
  %v368 = vrcp.pop %v366
  %v369 = vmul.f32 %v350, %v368
  %v370 = vrcp.pop %v367
  %v371 = vmul.f32 %v351, %v370
  %v372 = vpack.c.bf16 %v369, %v371
  %v373 = vunpack.c.h.bf16 %v345
  %v374 = vunpack.c.l.bf16 %v345
  %v375 = vrcp.pop %v373
  %v376 = vmul.f32 %v350, %v375
  %v377 = vrcp.pop %v374
  %v378 = vmul.f32 %v351, %v377
  %v379 = vpack.c.bf16 %v376, %v378
  %v380 = vunpack.c.h.bf16 %v346
  %v381 = vunpack.c.l.bf16 %v346
  %v382 = vrcp.pop %v380
  %v383 = vmul.f32 %v350, %v382
  %v384 = vrcp.pop %v381
  %v385 = vmul.f32 %v351, %v384
  %v386 = vpack.c.bf16 %v383, %v385
  %v387 = vunpack.c.h.bf16 %v347
  %v388 = vunpack.c.l.bf16 %v347
  %v389 = vrcp.pop %v387
  %v390 = vmul.f32 %v350, %v389
  %v391 = vrcp.pop %v388
  %v392 = vmul.f32 %v351, %v391
  %v393 = vpack.c.bf16 %v390, %v392
  %v394 = vunpack.c.h.bf16 %v348
  %v395 = vunpack.c.l.bf16 %v348
  %v396 = vrcp.pop %v394
  %v397 = vmul.f32 %v350, %v396
  %v398 = vrcp.pop %v395
  %v399 = vmul.f32 %v351, %v398
  %v400 = vpack.c.bf16 %v397, %v399
  %v401 = vunpack.c.h.bf16 %v349
  %v402 = vunpack.c.l.bf16 %v349
  %v403 = vrcp.pop %v401
  %v404 = vmul.f32 %v350, %v403
  %v405 = vrcp.pop %v402
  %v406 = vmul.f32 %v351, %v405
  %v407 = vpack.c.bf16 %v404, %v406
  %v408 = vunpack.c.l.bf16 %v278
  %v409 = vunpack.c.l.bf16 %v279
  %v410 = vunpack.c.l.bf16 %v280
  %v411 = vunpack.c.l.bf16 %v281
  %v412 = vunpack.c.l.bf16 %v282
  %v413 = vunpack.c.l.bf16 %v283
  %v414 = vunpack.c.l.bf16 %v284
  %v415 = vunpack.c.l.bf16 %v285
  %v416 = vunpack.c.l.bf16 %v358
  %v417 = vunpack.c.l.bf16 %v365
  %v418 = vunpack.c.l.bf16 %v372
  %v419 = vunpack.c.l.bf16 %v379
  %v420 = vunpack.c.l.bf16 %v386
  %v421 = vunpack.c.l.bf16 %v393
  %v422 = vunpack.c.l.bf16 %v400
  %v423 = vunpack.c.l.bf16 %v407
  %v424 = vmul.f32 %v408, %v416
  %v425 = vmul.f32 %v409, %v417
  %v426 = vmul.f32 %v410, %v418
  %v427 = vmul.f32 %v411, %v419
  %v428 = vmul.f32 %v412, %v420
  %v429 = vmul.f32 %v413, %v421
  %v430 = vmul.f32 %v414, %v422
  %v431 = vmul.f32 %v415, %v423
  %v432 = vpack.c.bf16 %v425, %v424
  %v433 = vpack.c.bf16 %v427, %v426
  %v434 = vpack.c.bf16 %v429, %v428
  %v435 = vpack.c.bf16 %v431, %v430
  %v436 = vld [vmem:[%s3] sm:$0xf]
  %v437 = vld [vmem:[%s3 + $0x4] sm:$0xf]
  %v438 = vld [vmem:[%s3 + $0x8] sm:$0xf]
  %v439 = vld [vmem:[%s3 + $0xc] sm:$0xf]
  %v440 = vld [vmem:[%s4] sm:$0xff]
  %v441 = vld [vmem:[%s4 + $0x8] sm:$0xff]
  %v442 = vld [vmem:[%s4 + $0x10] sm:$0xff]
  %v443 = vld [vmem:[%s4 + $0x18] sm:$0xff]
  %445 = vset.pattern.permute.xlu0 0
  %446 = vperm.xlu0 %445, %v440
  %v447 = vpop.permute.xlu0 %446
  %450 = vset.pattern.permute.xlu0 0
  %451 = vperm.xlu0 %450, %v441
  %v452 = vpop.permute.xlu0 %451
  %455 = vset.pattern.permute.xlu0 0
  %456 = vperm.xlu0 %455, %v442
  %v457 = vpop.permute.xlu0 %456
  %460 = vset.pattern.permute.xlu0 0
  %461 = vperm.xlu0 %460, %v443
  %v462 = vpop.permute.xlu0 %461
  %v468 = vunpack.c.l.b16 %v436
  %v469 = vunpack.c.l.b16 %v437
  %v470 = vunpack.c.l.b16 %v438
  %v471 = vunpack.c.l.b16 %v439
  %v472 = vpack.c.b16 %v469, %v468
  %v473 = vpack.c.b16 %v471, %v470
  %vm474 = vcmask 523264
  %v476 = vsel %vm474, %v472, 0
  %v479 = vsel %vm474, %v473, 0
  %481 = vmatpush.bf16.msra.mxu0 0
  %482 = vmatpush.bf16.msra.mxu0 0
  %483 = vmatpush.bf16.msra.mxu0 0
  %484 = vmatpush.bf16.msra.mxu0 0
  %485 = vmatpush.bf16.msra.mxu0 %v435
  %486 = vmatpush.bf16.msra.mxu0 %v434
  %487 = vmatpush.bf16.msra.mxu0 %v433
  %488 = vmatpush.bf16.msra.mxu0 %v432
  %489 = vmatmul.bf16.gmra.mxu0 %v476
  %v490 = vpop.f32.mrf.mxu0
  %v491 = vadd.f32 %v447, %v490
  %v492 = vpop.f32.mrf.mxu0
  %v493 = vadd.f32 %v452, %v492
  %494 = vmatmul.bf16.gmra.mxu0 %v479
  %v495 = vpop.f32.mrf.mxu0
  %v496 = vadd.f32 %v457, %v495
  %v497 = vpop.f32.mrf.mxu0
  %v498 = vadd.f32 %v462, %v497
  %499 = vdwg.mxu0
  %v500 = vpack.c.bf16 %v491, %v491
  %v501 = vpack.c.bf16 %v493, %v493
  %v502 = vpack.c.bf16 %v496, %v496
  %v503 = vpack.c.bf16 %v498, %v498
  %v504 = vxor.u32 %v500, 2147516416
  %v505 = vxor.u32 %v501, 2147516416
  %v506 = vxor.u32 %v502, 2147516416
  %v507 = vxor.u32 %v503, 2147516416
  %v508 = vunpack.c.l.bf16 %v504
  %v509 = vunpack.c.l.bf16 %v505
  %v510 = vunpack.c.l.bf16 %v506
  %v511 = vunpack.c.l.bf16 %v507
  %v512 = vmul.f32 %v508, 1.442695
  %v513 = vpow.pop %v512
  %v514 = vmul.f32 %v509, 1.442695
  %v515 = vpow.pop %v514
  %v516 = vmul.f32 %v510, 1.442695
  %v517 = vpow.pop %v516
  %v518 = vmul.f32 %v511, 1.442695
  %v519 = vpow.pop %v518
  %v520 = vpack.c.bf16 %v513, %v513
  %v521 = vpack.c.bf16 %v515, %v515
  %v522 = vpack.c.bf16 %v517, %v517
  %v523 = vpack.c.bf16 %v519, %v519
  %v524 = vunpack.c.l.bf16 %v520
  %v525 = vunpack.c.l.bf16 %v521
  %v526 = vunpack.c.l.bf16 %v522
  %v527 = vunpack.c.l.bf16 %v523
  %v528 = vadd.f32 %v524, 1.0
  %v529 = vadd.f32 %v525, 1.0
  %v530 = vadd.f32 %v526, 1.0
  %v531 = vadd.f32 %v527, 1.0
  %v532 = vpack.c.bf16 %v528, %v528
  %v533 = vpack.c.bf16 %v529, %v529
  %v534 = vpack.c.bf16 %v530, %v530
  %v535 = vpack.c.bf16 %v531, %v531
  %v536 = vunpack.c.h.bf16 %v532
  %v537 = vunpack.c.l.bf16 %v532
  %v538 = vrcp.pop %v536
  %v539 = vmul.f32 %v350, %v538
  %v540 = vrcp.pop %v537
  %v541 = vmul.f32 %v351, %v540
  %v542 = vpack.c.bf16 %v539, %v541
  %v543 = vunpack.c.h.bf16 %v533
  %v544 = vunpack.c.l.bf16 %v533
  %v545 = vrcp.pop %v543
  %v546 = vmul.f32 %v350, %v545
  %v547 = vrcp.pop %v544
  %v548 = vmul.f32 %v351, %v547
  %v549 = vpack.c.bf16 %v546, %v548
  %v550 = vunpack.c.h.bf16 %v534
  %v551 = vunpack.c.l.bf16 %v534
  %v552 = vrcp.pop %v550
  %v553 = vmul.f32 %v350, %v552
  %v554 = vrcp.pop %v551
  %v555 = vmul.f32 %v351, %v554
  %v556 = vpack.c.bf16 %v553, %v555
  %v557 = vunpack.c.h.bf16 %v535
  %v558 = vunpack.c.l.bf16 %v535
  %v559 = vrcp.pop %v557
  %v560 = vmul.f32 %v350, %v559
  %v561 = vrcp.pop %v558
  %v562 = vmul.f32 %v351, %v561
  %v563 = vpack.c.bf16 %v560, %v562
  %v564 = vunpack.c.l.bf16 %v500
  %v565 = vunpack.c.l.bf16 %v501
  %v566 = vunpack.c.l.bf16 %v502
  %v567 = vunpack.c.l.bf16 %v503
  %v568 = vunpack.c.l.bf16 %v542
  %v569 = vunpack.c.l.bf16 %v549
  %v570 = vunpack.c.l.bf16 %v556
  %v571 = vunpack.c.l.bf16 %v563
  %v572 = vmul.f32 %v564, %v568
  %v573 = vmul.f32 %v565, %v569
  %v574 = vmul.f32 %v566, %v570
  %v575 = vmul.f32 %v567, %v571
  %v576 = vpack.c.bf16 %v573, %v572
  %v577 = vpack.c.bf16 %v575, %v574
  %v578 = vld [vmem:[%s5] sm:$0xf]
  %v579 = vld [vmem:[%s6] sm:$0xff]
  %581 = vset.pattern.permute.xlu0 0
  %582 = vperm.xlu0 %581, %v579
  %v583 = vpop.permute.xlu0 %582
  %vm585 = vcmask 261120
  %v587 = vsel %vm585, %v578, 0
  %589 = vmatpush.bf16.msra.mxu0 0
  %590 = vmatpush.bf16.msra.mxu0 0
  %591 = vmatpush.bf16.msra.mxu0 0
  %592 = vmatpush.bf16.msra.mxu0 0
  %593 = vmatpush.bf16.msra.mxu0 0
  %594 = vmatpush.bf16.msra.mxu0 0
  %595 = vmatpush.bf16.msra.mxu0 %v577
  %596 = vmatpush.bf16.msra.mxu0 %v576
  %597 = vmatmul.bf16.gmra.mxu0 %v587
  %v598 = vpop.f32.mrf.mxu0
  %v599 = vadd.f32 %v583, %v598
  %v600 = vpop.f32.mrf.mxu0
  %601 = vdwg.mxu0
  %v602 = vlaneseq
  %v603 = vand.u32 %v602, 127
  %s604 = smul.u32 0, 128
  %v605 = vstv %s604
  %v606 = vadd.s32 %v603, %v605
  %v607 = vlaneseq
  %v608 = vshrl.u32 %v607, 7
  %v609 = vand.u32 %v606, 3
  %v610 = vand.u32 %v609, 1
  %v611 = vshra.s32 %v609, 1
  %vm612 = vcmp.eq.s32.totalorder %v608, 0
  %v613 = vsel %vm612, %v610, %v611
  %v614 = vcvt.s32.f32 %v613
  %v615 = vadd.f32 %v599, %v614
  %v616 = vmul.f32 %v615, 8.0
  %v617 = vmul.f32 %v599, 1.442695
  %v618 = vpow.pop %v617
  %v619 = vmul.f32 %v618, 8.0
  %v620 = vxor.u32 %v599, 2147483648
  %v621 = vmul.f32 %v620, 1.442695
  %v622 = vpow.pop %v621
  %v623 = vadd.f32 %v622, 1.0
  %v624 = vrcp.pop %v623
  %v625 = vmul.f32 %v623, %v624
  %v626 = vsub.f32 1.0, %v625
  %v627 = vmul.f32 %v624, %v626
  %v628 = vadd.f32 %v624, %v627
  %vm629 = vweird.f32 %v623
  %vm630 = vweird.f32 %v624
  %vm631 = vmor %vm629, %vm630
  %v632 = vsel %vm631, %v624, %v628
  %v633 = vand.u32 2147483647, %v623
  %vm634 = vcmp.eq.f32.partialorder %v633, 8.507059e+37
  %v635 = vand.u32 %v623, 2147483648
  %v636 = vor.u32 1.1754944e-38, %v635
  %v637 = vsel %vm634, %v636, %v632
  %v638 = vmul.f32 1.0, %v637
  %vm639 = vcmask 1041408
  %v640 = vsel %vm639, %v616, %v619
  %vm641 = vcmask 1043456
  %v642 = vsel %vm641, %v640, %v638
  %643 = vst [vmem:[%s7] sm:$0xff] %v642
  // Predicated region
  $region30: #{tscd_forward.5} parent=0 // pred_check
    _
  $region31: #{tscd_forward.5} parent=0 // pred_check_branch
    %645 = sbr.rel (0) target = $region33
  $region32: #{tscd_forward.5} parent=0 // pred_region
    _
  $region33: #{tscd_forward.5} parent=0 // pred_fallthru
    _
  // Predicated region
  $region34: #{tscd_forward.5} parent=0 // pred_check
    _
  $region35: #{tscd_forward.5} parent=0 // pred_check_branch
    %647 = sbr.rel (0) target = $region37
  $region36: #{tscd_forward.5} parent=0 // pred_region
    _
  $region37: #{tscd_forward.5} parent=0 // pred_fallthru
    _

// kernel: tscd_forward.3
$region0: #{tscd_forward.3}
  #allocation0 [shape = 'u32[]', space=smem, size = 0x4, offset = 0x4, fixed_abs, tag = 'smem constant byte address 0x4 - core index']
  #allocation1 [shape = 'u32[72,128]{1,0:T(1,128)}', space=vmem, size = 0x9000, scoped, tag = 'internal scratch']
  %s0 = inlined_call_operand.vmem [shape: bf16[128,16], index: 0, kind: input, shape index: {}]
  %s1 = inlined_call_operand.vmem [shape: bf16[16,16], index: 1, kind: input, shape index: {}]
  %s2 = inlined_call_operand.vmem [shape: f32[16,1], index: 2, kind: input, shape index: {}]
  %s3 = inlined_call_operand.vmem [shape: bf16[32,16], index: 3, kind: input, shape index: {}]
  %s4 = inlined_call_operand.vmem [shape: f32[32,1], index: 4, kind: input, shape index: {}]
  %s5 = inlined_call_operand.vmem [shape: bf16[8,32], index: 5, kind: input, shape index: {}]
  %s6 = inlined_call_operand.vmem [shape: f32[8,1], index: 6, kind: input, shape index: {}]
  %s7 = inlined_call_operand.vmem [shape: f32[8,128], index: 7, kind: output, shape index: {}]
  %s8 = sld [smem:[#allocation0]]
  $region38: #{tscd_forward.3} parent=0
    _
  %s10 = ssub.s32 1, %s8
  %s11 = scalar_select 0, %s10, %s8
  // Predicated region
  $region2: #{tscd_forward.3} parent=0 // pred_check
    _
  $region3: #{tscd_forward.3} parent=0 // pred_check_branch
    %13 = sbr.rel (0) target = $region5
  $region4: #{tscd_forward.3} parent=0 // pred_region
    _
  $region5: #{tscd_forward.3} parent=0 // pred_fallthru
    _
  // Predicated region
  $region6: #{tscd_forward.3} parent=0 // pred_check
    _
  $region7: #{tscd_forward.3} parent=0 // pred_check_branch
    %15 = sbr.rel (0) target = $region9
  $region8: #{tscd_forward.3} parent=0 // pred_region
    _
  $region9: #{tscd_forward.3} parent=0 // pred_fallthru
    _
  // Predicated region
  $region10: #{tscd_forward.3} parent=0 // pred_check
    _
  $region11: #{tscd_forward.3} parent=0 // pred_check_branch
    %17 = sbr.rel (0) target = $region13
  $region12: #{tscd_forward.3} parent=0 // pred_region
    _
  $region13: #{tscd_forward.3} parent=0 // pred_fallthru
    _
  // Predicated region
  $region14: #{tscd_forward.3} parent=0 // pred_check
    _
  $region15: #{tscd_forward.3} parent=0 // pred_check_branch
    %19 = sbr.rel (0) target = $region17
  $region16: #{tscd_forward.3} parent=0 // pred_region
    _
  $region17: #{tscd_forward.3} parent=0 // pred_fallthru
    _
  // Predicated region
  $region18: #{tscd_forward.3} parent=0 // pred_check
    _
  $region19: #{tscd_forward.3} parent=0 // pred_check_branch
    %21 = sbr.rel (0) target = $region21
  $region20: #{tscd_forward.3} parent=0 // pred_region
    _
  $region21: #{tscd_forward.3} parent=0 // pred_fallthru
    _
  // Predicated region
  $region22: #{tscd_forward.3} parent=0 // pred_check
    _
  $region23: #{tscd_forward.3} parent=0 // pred_check_branch
    %23 = sbr.rel (0) target = $region25
  $region24: #{tscd_forward.3} parent=0 // pred_region
    _
  $region25: #{tscd_forward.3} parent=0 // pred_fallthru
    _
  // Predicated region
  $region26: #{tscd_forward.3} parent=0 // pred_check
    _
  $region27: #{tscd_forward.3} parent=0 // pred_check_branch
    %25 = sbr.rel (0) target = $region29
  $region28: #{tscd_forward.3} parent=0 // pred_region
    _
  $region29: #{tscd_forward.3} parent=0 // pred_fallthru
    _
  %v28 = vld [vmem:[%s1] sm:$0xf]
  %v29 = vld [vmem:[%s1 + $0x4] sm:$0xf]
  %v30 = vld [vmem:[%s0] sm:$0xf]
  %v31 = vld [vmem:[%s0 + $0x4] sm:$0xf]
  %v32 = vld [vmem:[%s0 + $0x8] sm:$0xf]
  %v33 = vld [vmem:[%s0 + $0xc] sm:$0xf]
  %v34 = vld [vmem:[%s0 + $0x10] sm:$0xf]
  %v35 = vld [vmem:[%s0 + $0x14] sm:$0xf]
  %v36 = vld [vmem:[%s0 + $0x18] sm:$0xf]
  %v37 = vld [vmem:[%s0 + $0x1c] sm:$0xf]
  %v38 = vld [vmem:[%s0 + $0x20] sm:$0xf]
  %v39 = vld [vmem:[%s0 + $0x24] sm:$0xf]
  %v40 = vld [vmem:[%s0 + $0x28] sm:$0xf]
  %v41 = vld [vmem:[%s0 + $0x2c] sm:$0xf]
  %v42 = vld [vmem:[%s0 + $0x30] sm:$0xf]
  %v43 = vld [vmem:[%s0 + $0x34] sm:$0xf]
  %v44 = vld [vmem:[%s0 + $0x38] sm:$0xf]
  %v45 = vld [vmem:[%s0 + $0x3c] sm:$0xf]
  %v46 = vld [vmem:[%s2] sm:$0xff]
  %v47 = vld [vmem:[%s2 + $0x8] sm:$0xff]
  %49 = vset.pattern.permute.xlu0 0
  %50 = vperm.xlu0 %49, %v46
  %v51 = vpop.permute.xlu0 %50
  %54 = vset.pattern.permute.xlu0 0
  %55 = vperm.xlu0 %54, %v47
  %v56 = vpop.permute.xlu0 %55
  %v60 = vunpack.c.l.b16 %v28
  %v61 = vunpack.c.l.b16 %v29
  %v62 = vpack.c.b16 %v61, %v60
  %v79 = vunpack.c.l.b16 %v30
  %v80 = vunpack.c.l.b16 %v31
  %v81 = vunpack.c.l.b16 %v32
  %v82 = vunpack.c.l.b16 %v33
  %v83 = vunpack.c.l.b16 %v34
  %v84 = vunpack.c.l.b16 %v35
  %v85 = vunpack.c.l.b16 %v36
  %v86 = vunpack.c.l.b16 %v37
  %v87 = vunpack.c.l.b16 %v38
  %v88 = vunpack.c.l.b16 %v39
  %v89 = vunpack.c.l.b16 %v40
  %v90 = vunpack.c.l.b16 %v41
  %v91 = vunpack.c.l.b16 %v42
  %v92 = vunpack.c.l.b16 %v43
  %v93 = vunpack.c.l.b16 %v44
  %v94 = vunpack.c.l.b16 %v45
  %v95 = vpack.c.b16 %v80, %v79
  %v96 = vpack.c.b16 %v82, %v81
  %v97 = vpack.c.b16 %v84, %v83
  %v98 = vpack.c.b16 %v86, %v85
  %v99 = vpack.c.b16 %v88, %v87
  %v100 = vpack.c.b16 %v90, %v89
  %v101 = vpack.c.b16 %v92, %v91
  %v102 = vpack.c.b16 %v94, %v93
  %vm103 = vcmask 130048
  %v105 = vsel %vm103, %v62, 0
  %v108 = vsel %vm103, %v95, 0
  %v111 = vsel %vm103, %v96, 0
  %v114 = vsel %vm103, %v97, 0
  %v117 = vsel %vm103, %v98, 0
  %v120 = vsel %vm103, %v99, 0
  %v123 = vsel %vm103, %v100, 0
  %v126 = vsel %vm103, %v101, 0
  %v129 = vsel %vm103, %v102, 0
  %131 = vmatpush.bf16.xpose.msra.mxu0 %v129
  %132 = vmatpush.bf16.xpose.msra.mxu0 %v126
  %133 = vmatpush.bf16.xpose.msra.mxu0 %v123
  %134 = vmatpush.bf16.xpose.msra.mxu0 %v120
  %135 = vmatpush.bf16.xpose.msra.mxu0 %v117
  %136 = vmatpush.bf16.xpose.msra.mxu0 %v114
  %137 = vmatpush.bf16.xpose.msra.mxu0 %v111
  %138 = vmatpush.bf16.xpose.msra.mxu0 %v108
  %139 = vmatmul.bf16.gmra.mxu0 %v105
  %v140 = vpop.f32.mrf.mxu0
  %v141 = vadd.f32 %v51, %v140
  %v142 = vpop.f32.mrf.mxu0
  %v143 = vadd.f32 %v56, %v142
  %144 = vdwg.mxu0
  %v145 = vpack.c.bf16 %v141, %v141
  %v146 = vpack.c.bf16 %v143, %v143
  %v147 = vxor.u32 %v145, 2147516416
  %v148 = vxor.u32 %v146, 2147516416
  %v149 = vunpack.c.l.bf16 %v147
  %v150 = vunpack.c.l.bf16 %v148
  %v151 = vmul.f32 %v149, 1.442695
  %v152 = vpow.pop %v151
  %v153 = vmul.f32 %v150, 1.442695
  %v154 = vpow.pop %v153
  %v155 = vpack.c.bf16 %v152, %v152
  %v156 = vpack.c.bf16 %v154, %v154
  %v157 = vunpack.c.l.bf16 %v155
  %v158 = vunpack.c.l.bf16 %v156
  %v159 = vadd.f32 %v157, 1.0
  %v160 = vadd.f32 %v158, 1.0
  %v161 = vpack.c.bf16 %v159, %v159
  %v162 = vpack.c.bf16 %v160, %v160
  %v163 = vunpack.c.h.bf16 1065369472
  %v164 = vunpack.c.l.bf16 1065369472
  %v165 = vunpack.c.h.bf16 %v161
  %v166 = vunpack.c.l.bf16 %v161
  %v167 = vrcp.pop %v165
  %v168 = vmul.f32 %v163, %v167
  %v169 = vrcp.pop %v166
  %v170 = vmul.f32 %v164, %v169
  %v171 = vpack.c.bf16 %v168, %v170
  %v172 = vunpack.c.h.bf16 %v162
  %v173 = vunpack.c.l.bf16 %v162
  %v174 = vrcp.pop %v172
  %v175 = vmul.f32 %v163, %v174
  %v176 = vrcp.pop %v173
  %v177 = vmul.f32 %v164, %v176
  %v178 = vpack.c.bf16 %v175, %v177
  %v179 = vunpack.c.l.bf16 %v145
  %v180 = vunpack.c.l.bf16 %v146
  %v181 = vunpack.c.l.bf16 %v171
  %v182 = vunpack.c.l.bf16 %v178
  %v183 = vmul.f32 %v179, %v181
  %v184 = vmul.f32 %v180, %v182
  %v185 = vpack.c.bf16 %v184, %v183
  %v186 = vld [vmem:[%s3] sm:$0xf]
  %v187 = vld [vmem:[%s3 + $0x4] sm:$0xf]
  %v188 = vld [vmem:[%s3 + $0x8] sm:$0xf]
  %v189 = vld [vmem:[%s3 + $0xc] sm:$0xf]
  %v190 = vld [vmem:[%s4] sm:$0xff]
  %v191 = vld [vmem:[%s4 + $0x8] sm:$0xff]
  %v192 = vld [vmem:[%s4 + $0x10] sm:$0xff]
  %v193 = vld [vmem:[%s4 + $0x18] sm:$0xff]
  %195 = vset.pattern.permute.xlu0 0
  %196 = vperm.xlu0 %195, %v190
  %v197 = vpop.permute.xlu0 %196
  %200 = vset.pattern.permute.xlu0 0
  %201 = vperm.xlu0 %200, %v191
  %v202 = vpop.permute.xlu0 %201
  %205 = vset.pattern.permute.xlu0 0
  %206 = vperm.xlu0 %205, %v192
  %v207 = vpop.permute.xlu0 %206
  %210 = vset.pattern.permute.xlu0 0
  %211 = vperm.xlu0 %210, %v193
  %v212 = vpop.permute.xlu0 %211
  %v218 = vunpack.c.l.b16 %v186
  %v219 = vunpack.c.l.b16 %v187
  %v220 = vunpack.c.l.b16 %v188
  %v221 = vunpack.c.l.b16 %v189
  %v222 = vpack.c.b16 %v219, %v218
  %v223 = vpack.c.b16 %v221, %v220
  %v225 = vsel %vm103, %v222, 0
  %v228 = vsel %vm103, %v223, 0
  %230 = vmatpush.bf16.msra.mxu0 0
  %231 = vmatpush.bf16.msra.mxu0 0
  %232 = vmatpush.bf16.msra.mxu0 0
  %233 = vmatpush.bf16.msra.mxu0 0
  %234 = vmatpush.bf16.msra.mxu0 0
  %235 = vmatpush.bf16.msra.mxu0 0
  %236 = vmatpush.bf16.msra.mxu0 0
  %237 = vmatpush.bf16.msra.mxu0 %v185
  %238 = vmatmul.bf16.gmra.mxu0 %v225
  %v239 = vpop.f32.mrf.mxu0
  %v240 = vadd.f32 %v197, %v239
  %v241 = vpop.f32.mrf.mxu0
  %v242 = vadd.f32 %v202, %v241
  %243 = vmatmul.bf16.gmra.mxu0 %v228
  %v244 = vpop.f32.mrf.mxu0
  %v245 = vadd.f32 %v207, %v244
  %v246 = vpop.f32.mrf.mxu0
  %v247 = vadd.f32 %v212, %v246
  %248 = vdwg.mxu0
  %v249 = vpack.c.bf16 %v240, %v240
  %v250 = vpack.c.bf16 %v242, %v242
  %v251 = vpack.c.bf16 %v245, %v245
  %v252 = vpack.c.bf16 %v247, %v247
  %v253 = vxor.u32 %v249, 2147516416
  %v254 = vxor.u32 %v250, 2147516416
  %v255 = vxor.u32 %v251, 2147516416
  %v256 = vxor.u32 %v252, 2147516416
  %v257 = vunpack.c.l.bf16 %v253
  %v258 = vunpack.c.l.bf16 %v254
  %v259 = vunpack.c.l.bf16 %v255
  %v260 = vunpack.c.l.bf16 %v256
  %v261 = vmul.f32 %v257, 1.442695
  %v262 = vpow.pop %v261
  %v263 = vmul.f32 %v258, 1.442695
  %v264 = vpow.pop %v263
  %v265 = vmul.f32 %v259, 1.442695
  %v266 = vpow.pop %v265
  %v267 = vmul.f32 %v260, 1.442695
  %v268 = vpow.pop %v267
  %v269 = vpack.c.bf16 %v262, %v262
  %v270 = vpack.c.bf16 %v264, %v264
  %v271 = vpack.c.bf16 %v266, %v266
  %v272 = vpack.c.bf16 %v268, %v268
  %v273 = vunpack.c.l.bf16 %v269
  %v274 = vunpack.c.l.bf16 %v270
  %v275 = vunpack.c.l.bf16 %v271
  %v276 = vunpack.c.l.bf16 %v272
  %v277 = vadd.f32 %v273, 1.0
  %v278 = vadd.f32 %v274, 1.0
  %v279 = vadd.f32 %v275, 1.0
  %v280 = vadd.f32 %v276, 1.0
  %v281 = vpack.c.bf16 %v277, %v277
  %v282 = vpack.c.bf16 %v278, %v278
  %v283 = vpack.c.bf16 %v279, %v279
  %v284 = vpack.c.bf16 %v280, %v280
  %v285 = vunpack.c.h.bf16 %v281
  %v286 = vunpack.c.l.bf16 %v281
  %v287 = vrcp.pop %v285
  %v288 = vmul.f32 %v163, %v287
  %v289 = vrcp.pop %v286
  %v290 = vmul.f32 %v164, %v289
  %v291 = vpack.c.bf16 %v288, %v290
  %v292 = vunpack.c.h.bf16 %v282
  %v293 = vunpack.c.l.bf16 %v282
  %v294 = vrcp.pop %v292
  %v295 = vmul.f32 %v163, %v294
  %v296 = vrcp.pop %v293
  %v297 = vmul.f32 %v164, %v296
  %v298 = vpack.c.bf16 %v295, %v297
  %v299 = vunpack.c.h.bf16 %v283
  %v300 = vunpack.c.l.bf16 %v283
  %v301 = vrcp.pop %v299
  %v302 = vmul.f32 %v163, %v301
  %v303 = vrcp.pop %v300
  %v304 = vmul.f32 %v164, %v303
  %v305 = vpack.c.bf16 %v302, %v304
  %v306 = vunpack.c.h.bf16 %v284
  %v307 = vunpack.c.l.bf16 %v284
  %v308 = vrcp.pop %v306
  %v309 = vmul.f32 %v163, %v308
  %v310 = vrcp.pop %v307
  %v311 = vmul.f32 %v164, %v310
  %v312 = vpack.c.bf16 %v309, %v311
  %v313 = vunpack.c.l.bf16 %v249
  %v314 = vunpack.c.l.bf16 %v250
  %v315 = vunpack.c.l.bf16 %v251
  %v316 = vunpack.c.l.bf16 %v252
  %v317 = vunpack.c.l.bf16 %v291
  %v318 = vunpack.c.l.bf16 %v298
  %v319 = vunpack.c.l.bf16 %v305
  %v320 = vunpack.c.l.bf16 %v312
  %v321 = vmul.f32 %v313, %v317
  %v322 = vmul.f32 %v314, %v318
  %v323 = vmul.f32 %v315, %v319
  %v324 = vmul.f32 %v316, %v320
  %v325 = vpack.c.bf16 %v322, %v321
  %v326 = vpack.c.bf16 %v324, %v323
  %v327 = vld [vmem:[%s5] sm:$0xf]
  %v328 = vld [vmem:[%s6] sm:$0xff]
  %330 = vset.pattern.permute.xlu0 0
  %331 = vperm.xlu0 %330, %v328
  %v332 = vpop.permute.xlu0 %331
  %vm334 = vcmask 261120
  %v336 = vsel %vm334, %v327, 0
  %338 = vmatpush.bf16.msra.mxu0 0
  %339 = vmatpush.bf16.msra.mxu0 0
  %340 = vmatpush.bf16.msra.mxu0 0
  %341 = vmatpush.bf16.msra.mxu0 0
  %342 = vmatpush.bf16.msra.mxu0 0
  %343 = vmatpush.bf16.msra.mxu0 0
  %344 = vmatpush.bf16.msra.mxu0 %v326
  %345 = vmatpush.bf16.msra.mxu0 %v325
  %346 = vmatmul.bf16.gmra.mxu0 %v336
  %v347 = vpop.f32.mrf.mxu0
  %v348 = vadd.f32 %v332, %v347
  %v349 = vpop.f32.mrf.mxu0
  %350 = vdwg.mxu0
  %v351 = vlaneseq
  %v352 = vand.u32 %v351, 127
  %s353 = smul.u32 0, 128
  %v354 = vstv %s353
  %v355 = vadd.s32 %v352, %v354
  %v356 = vlaneseq
  %v357 = vshrl.u32 %v356, 7
  %v358 = vand.u32 %v355, 63
  %v359 = vand.u32 %v358, 7
  %v360 = vshra.s32 %v358, 3
  %vm361 = vcmp.eq.s32.totalorder %v357, 0
  %v362 = vsel %vm361, %v359, %v360
  %v363 = vcvt.s32.f32 %v362
  %v364 = vadd.f32 %v348, %v363
  %v365 = vmul.f32 %v364, 2.0
  %v366 = vmul.f32 %v348, 1.442695
  %v367 = vpow.pop %v366
  %v368 = vmul.f32 %v367, 2.0
  %v369 = vxor.u32 %v348, 2147483648
  %v370 = vmul.f32 %v369, 1.442695
  %v371 = vpow.pop %v370
  %v372 = vadd.f32 %v371, 1.0
  %v373 = vrcp.pop %v372
  %v374 = vmul.f32 %v372, %v373
  %v375 = vsub.f32 1.0, %v374
  %v376 = vmul.f32 %v373, %v375
  %v377 = vadd.f32 %v373, %v376
  %vm378 = vweird.f32 %v372
  %vm379 = vweird.f32 %v373
  %vm380 = vmor %vm378, %vm379
  %v381 = vsel %vm380, %v373, %v377
  %v382 = vand.u32 2147483647, %v372
  %vm383 = vcmp.eq.f32.partialorder %v382, 8.507059e+37
  %v384 = vand.u32 %v372, 2147483648
  %v385 = vor.u32 1.1754944e-38, %v384
  %v386 = vsel %vm383, %v385, %v381
  %v387 = vmul.f32 1.0, %v386
  %vm388 = vcmask 1041408
  %v389 = vsel %vm388, %v365, %v368
  %vm390 = vcmask 1043456
  %v391 = vsel %vm390, %v389, %v387
  %392 = vst [vmem:[%s7] sm:$0xff] %v391
  // Predicated region
  $region30: #{tscd_forward.3} parent=0 // pred_check
    _
  $region31: #{tscd_forward.3} parent=0 // pred_check_branch
    %394 = sbr.rel (0) target = $region33
  $region32: #{tscd_forward.3} parent=0 // pred_region
    _
  $region33: #{tscd_forward.3} parent=0 // pred_fallthru
    _
  // Predicated region
  $region34: #{tscd_forward.3} parent=0 // pred_check
    _
  $region35: #{tscd_forward.3} parent=0 // pred_check_branch
    %396 = sbr.rel (0) target = $region37
  $region36: #{tscd_forward.3} parent=0 // pred_region
    _
  $region37: #{tscd_forward.3} parent=0 // pred_fallthru
    _

</llo_original>
